<compile_context>
chip_gen: v7x
topology: tpu7x:2x2x1
jax: 0.10.0
libtpu: 0.0.40
codegen_flags: <defaults>
</compile_context>

<pallas_src>
import jax
import jax.numpy as jnp
from jax.experimental import pallas as pl
from jax.experimental.pallas import tpu as pltpu


# ----------------------------------------------------------------------------- kernel


def _brightness_kernel(p_ref, x_ref, o_ref):
    # p_ref: (1,) brightness parameter in SMEM (clamped on the scalar unit: free)
    # x_ref / o_ref: (TILE_R, LANE) VMEM tiles
    p = jnp.clip(p_ref[0], 0.0, 1.0)
    y = x_ref[...].astype(jnp.float32) + p
    o_ref[...] = jnp.clip(y, 0.0, 1.0).astype(o_ref.dtype)


def _reference(x, trans_param):
    p = jnp.clip(jnp.asarray(trans_param, jnp.float32).ravel()[0], 0.0, 1.0)
    return jnp.clip(x.astype(jnp.float32) + p, 0.0, 1.0).astype(x.dtype)


# ----------------------------------------------------------------------------- tuning

_TARGET_BLOCK_BYTES = 4 * 1024 * 1024   # ~4 MiB blocks: 86% of HBM roofline on v6e,
                                        # halves per-step overhead (biggest win on v7x)
_SMALL_INPUT_BYTES = 1 * 1024 * 1024    # below ~1 MiB the fused XLA op is strictly faster
_MIN_GRID_STEPS = 4                     # keep >=4 grid steps: both v7x TCs + pipelining

_CORE_PARALLEL = getattr(pltpu, "CORE_PARALLEL", None)
_DIM_SEMANTICS_CACHE = []               # remembers which semantics compiled on this chip


# ----------------------------------------------------------------------------- wrapper


def _pallas_brightness(p, xf, tile_r, lane, rows, dtype, n, itemsize):
    grid = (pl.cdiv(rows, tile_r),)     # trailing partial block is masked by Pallas

    block_bytes = tile_r * lane * itemsize
    # 2 arrays x 2 pipeline buffers x block, plus headroom for internal scratch.
    # Explicit so v5e's 16 MiB scoped default never rejects the 4 MiB tiles;
    # stays well under v7x's 64 MiB physical VMEM.
    vmem_limit = max(16 << 20, min(48 << 20, 4 * block_bytes + (4 << 20)))

    cost = pl.CostEstimate(
        flops=3 * n,                    # add + 2 clamp bounds per element
        transcendentals=0,
        bytes_accessed=2 * n * itemsize,
    )

    if _DIM_SEMANTICS_CACHE:
        candidates = [_DIM_SEMANTICS_CACHE[0]]
    else:
        candidates = []
        if _CORE_PARALLEL is not None:
            candidates.append((_CORE_PARALLEL,))   # shards the grid across v7x's 2 TCs
        candidates.append(("parallel",))           # safe / no-op on single-TC chips

    last_err = None
    for sem in candidates:
        try:
            out = pl.pallas_call(
                _brightness_kernel,
                out_shape=jax.ShapeDtypeStruct((rows, lane), dtype),
                grid=grid,
                in_specs=[
                    pl.BlockSpec(memory_space=pltpu.SMEM),             # scalar param
                    pl.BlockSpec((tile_r, lane), lambda i: (i, 0)),    # image tile
                ],
                out_specs=pl.BlockSpec((tile_r, lane), lambda i: (i, 0)),
                compiler_params=pltpu.CompilerParams(
                    dimension_semantics=sem,
                    vmem_limit_bytes=vmem_limit,
                ),
                cost_estimate=cost,
            )(p, xf)
            if not _DIM_SEMANTICS_CACHE:
                _DIM_SEMANTICS_CACHE.append(sem)
            return out
        except Exception as e:          # noqa: BLE001 - fall back to next semantics
            last_err = e
            continue
    raise last_err


def adjust_brightness(x, trans_param):
    """x: (B, C, H, W) float image in [0, 1]; trans_param: scalar or (1,) float."""
    # Defensive normalization: accept 0-d scalars or (1,) tensors alike.
    p = jnp.asarray(trans_param, dtype=jnp.float32).ravel()[:1]

    n = x.size
    itemsize = jnp.dtype(x.dtype).itemsize

    # Pick the widest lane-dense last dim (multiple of 128) that divides n exactly,
    # so the reshape is a free view (no pad, no copy).
    lane = None
    for cand in (1024, 512, 256, 128):
        if n % cand == 0:
            lane = cand
            break

    # Small-input / awkward-size fallback: a single fused XLA op is already at roofline.
    if lane is None or n * itemsize < _SMALL_INPUT_BYTES:
        return _reference(x, p)

    rows = n // lane

    # Sublane alignment by dtype packing (f32: 8, bf16: 16, int8/fp8: 32).
    sublane = {4: 8, 2: 16, 1: 32}.get(itemsize, 8)

    # Largest sublane-aligned tile under ~4 MiB ...
    max_tile_r = max(sublane,
                     (_TARGET_BLOCK_BYTES // (lane * itemsize)) // sublane * sublane)
    # ... but capped so the grid always has >= _MIN_GRID_STEPS steps
    # (keeps both v7x TensorCores busy and the pipeline overlapped).
    target_r = (rows + _MIN_GRID_STEPS - 1) // _MIN_GRID_STEPS
    target_r = ((target_r + sublane - 1) // sublane) * sublane
    tile_r = max(sublane, min(max_tile_r, target_r))

    xf = x.reshape(rows, lane)          # contiguous view: no copy, no padding

    out = _pallas_brightness(p, xf, tile_r, lane, rows, x.dtype, n, itemsize)
    return out.reshape(x.shape)


# ----------------------------------------------------------------------------- test


if __name__ == "__main__":
    key = jax.random.PRNGKey(0)

    # Deterministic "learned" parameter (same shape as torch.Tensor([init_param])).
    init_param = 0.3
    trans_param = jnp.array([init_param], dtype=jnp.float32)

    shapes = [
        (2, 4, 16, 16),      # tiny: exercises the small-input XLA fallback
        (2, 4, 128, 128),    # 512 KiB: still below the ~1 MiB crossover -> XLA fallback
        (6, 3, 224, 224),    # ~3.4 MiB: Pallas path, 4 grid steps (partial trailing block)
        (8, 3, 256, 256),    # ~6 MiB:  Pallas path, 4 grid steps at ~1.5 MiB tiles
    ]

    for i, shape in enumerate(shapes):
        k = jax.random.fold_in(key, i)
        x = jax.random.uniform(k, shape, dtype=jnp.float32)
        out = jax.block_until_ready(adjust_brightness(x, trans_param))
        ref = _reference(x, trans_param)
        assert out.shape == x.shape and out.dtype == x.dtype
        assert float(jnp.max(jnp.abs(out - ref))) < 1e-6

    # 0-d scalar param also accepted (defensive normalization).
    out = jax.block_until_ready(adjust_brightness(
        jax.random.uniform(jax.random.fold_in(key, 99), (6, 3, 224, 224), dtype=jnp.float32),
        jnp.float32(0.7)))
    assert out.shape == (6, 3, 224, 224)

    print("KERNEL_OK")
</pallas_src>

<mosaic_0001>
module attributes {stable_mosaic.version = 11 : i64} {
  func.func @_brightness_kernel(%arg0: i32, %arg1: memref<1xf32, #tpu.memory_space<smem>>, %arg2: memref<224x1024xf32, #tpu.memory_space<vmem>>, %arg3: memref<224x1024xf32, #tpu.memory_space<vmem>>) attributes {dimension_semantics = [#tpu.dimension_semantics<core_parallel>], iteration_bounds = array<i64: 4>, scalar_prefetch = 0 : i64, scratch_operands = 0 : i64, tpu.core_type = #tpu.core_type<tc>, window_params = [{transform_indices = @transform_0, window_bounds = array<i64: 1>}, {transform_indices = @transform_1, window_bounds = array<i64: 224, 1024>}, {transform_indices = @transform_2, window_bounds = array<i64: 224, 1024>}]} {
    %c0 = arith.constant 0 : index
    %0 = memref.load %arg1[%c0] : memref<1xf32, #tpu.memory_space<smem>>
    %cst = arith.constant 0.000000e+00 : f32
    %cst_0 = arith.constant 1.000000e+00 : f32
    %1 = arith.maximumf %cst, %0 : f32
    %2 = arith.minimumf %cst_0, %1 : f32
    %c0_1 = arith.constant 0 : index
    %c0_2 = arith.constant 0 : index
    %3 = vector.load %arg2[%c0_1, %c0_2] : memref<224x1024xf32, #tpu.memory_space<vmem>>, vector<224x1024xf32>
    %4 = vector.broadcast %2 : f32 to vector<224x1024xf32>
    %5 = arith.addf %3, %4 : vector<224x1024xf32>
    %cst_3 = arith.constant 0.000000e+00 : f32
    %cst_4 = arith.constant 1.000000e+00 : f32
    %6 = vector.broadcast %cst_3 : f32 to vector<224x1024xf32>
    %7 = arith.maximumf %6, %5 : vector<224x1024xf32>
    %8 = vector.broadcast %cst_4 : f32 to vector<224x1024xf32>
    %9 = arith.minimumf %8, %7 : vector<224x1024xf32>
    %c0_5 = arith.constant 0 : index
    %c0_6 = arith.constant 0 : index
    %10 = vector.load %arg3[%c0_5, %c0_6] : memref<224x1024xf32, #tpu.memory_space<vmem>>, vector<224x1024xf32>
    tpu.vector_store %arg3[%c0_5, %c0_6], %9 {strides = array<i32>} : memref<224x1024xf32, #tpu.memory_space<vmem>>, vector<224x1024xf32>,
    return
  }
  func.func @transform_0(%arg0: i32) -> i32 {
    %c0_i32 = arith.constant 0 : i32
    %c0_i32_0 = arith.constant 0 : i32
    return %c0_i32 : i32
  }
  func.func @transform_1(%arg0: i32) -> (i32, i32) {
    %c0_i32 = arith.constant 0 : i32
    %c0_i32_0 = arith.constant 0 : i32
    return %arg0, %c0_i32 : i32, i32
  }
  func.func @transform_2(%arg0: i32) -> (i32, i32) {
    %c0_i32 = arith.constant 0 : i32
    %c0_i32_0 = arith.constant 0 : i32
    return %arg0, %c0_i32 : i32, i32
  }
}

module attributes {stable_mosaic.version = 11 : i64} {
  func.func @_brightness_kernel(%arg0: i32, %arg1: memref<1xf32, #tpu.memory_space<smem>>, %arg2: memref<224x1024xf32, #tpu.memory_space<vmem>>, %arg3: memref<224x1024xf32, #tpu.memory_space<vmem>>) attributes {dimension_semantics = [#tpu.dimension_semantics<parallel>], iteration_bounds = array<i64: 4>, scalar_prefetch = 0 : i64, scratch_operands = 0 : i64, tpu.core_type = #tpu.core_type<tc>, window_params = [{transform_indices = @transform_0, window_bounds = array<i64: 1>}, {transform_indices = @transform_1, window_bounds = array<i64: 224, 1024>}, {transform_indices = @transform_2, window_bounds = array<i64: 224, 1024>}]} {
    %c0 = arith.constant 0 : index
    %0 = memref.load %arg1[%c0] : memref<1xf32, #tpu.memory_space<smem>>
    %cst = arith.constant 0.000000e+00 : f32
    %cst_0 = arith.constant 1.000000e+00 : f32
    %1 = arith.maximumf %cst, %0 : f32
    %2 = arith.minimumf %cst_0, %1 : f32
    %c0_1 = arith.constant 0 : index
    %c0_2 = arith.constant 0 : index
    %3 = vector.load %arg2[%c0_1, %c0_2] : memref<224x1024xf32, #tpu.memory_space<vmem>>, vector<224x1024xf32>
    %4 = vector.broadcast %2 : f32 to vector<224x1024xf32>
    %5 = arith.addf %3, %4 : vector<224x1024xf32>
    %cst_3 = arith.constant 0.000000e+00 : f32
    %cst_4 = arith.constant 1.000000e+00 : f32
    %6 = vector.broadcast %cst_3 : f32 to vector<224x1024xf32>
    %7 = arith.maximumf %6, %5 : vector<224x1024xf32>
    %8 = vector.broadcast %cst_4 : f32 to vector<224x1024xf32>
    %9 = arith.minimumf %8, %7 : vector<224x1024xf32>
    %c0_5 = arith.constant 0 : index
    %c0_6 = arith.constant 0 : index
    %10 = vector.load %arg3[%c0_5, %c0_6] : memref<224x1024xf32, #tpu.memory_space<vmem>>, vector<224x1024xf32>
    tpu.vector_store %arg3[%c0_5, %c0_6], %9 {strides = array<i32>} : memref<224x1024xf32, #tpu.memory_space<vmem>>, vector<224x1024xf32>,
    return
  }
  func.func @transform_0(%arg0: i32) -> i32 {
    %c0_i32 = arith.constant 0 : i32
    %c0_i32_0 = arith.constant 0 : i32
    return %c0_i32 : i32
  }
  func.func @transform_1(%arg0: i32) -> (i32, i32) {
    %c0_i32 = arith.constant 0 : i32
    %c0_i32_0 = arith.constant 0 : i32
    return %arg0, %c0_i32 : i32, i32
  }
  func.func @transform_2(%arg0: i32) -> (i32, i32) {
    %c0_i32 = arith.constant 0 : i32
    %c0_i32_0 = arith.constant 0 : i32
    return %arg0, %c0_i32 : i32, i32
  }
}

</mosaic_0001>

<llo_original>
// kernel: tpu_custom_call.1
$region0: #{tpu_custom_call.1}
  #allocation0 [shape = 'u32[]', space=smem, size = 0x4, offset = 0x4, fixed_abs, tag = 'smem constant byte address 0x4 - core index']
  #allocation1 [shape = 'u32[144,128]{1,0:T(1,128)}', space=vmem, size = 0x12000, scoped, tag = 'internal scratch']
  #allocation2 [shape = 'f32[1]{0:T(128)S(6)}', space=smem, size = 0x200, scoped, tag = 'scoped memory for tpu_custom_call.1']
  %s0 = inlined_call_operand.<no memory space> [shape: f32[1], index: 0, kind: input, shape index: {}]
  %s1 = inlined_call_operand.hbm [shape: f32[882,1024], index: 1, kind: input, shape index: {}]
  %s2 = inlined_call_operand.hbm [shape: f32[882,1024], index: 2, kind: output, shape index: {}]
  %s3 = sld [smem:[#allocation0]]
  $region45: #{tpu_custom_call.1} parent=0
    _
  %s5 = ssub.s32 1, %s3
  %s6 = scalar_select 0, %s5, %s3
  %7 = sst [smem:[#allocation2]] %s0
  $region1: #{tpu_custom_call.1} parent=0
    #allocation3 [shape = 'u8[1835008]{0}', space=vmem, size = 0x1c0000, scoped, tag = 'input window, operand 1']
    #allocation4 [shape = 's32[2]{0}', space=sflag, size = 0x8, scoped, tag = 'scoped memory for tpu_custom_call.1']
    #allocation5 [shape = 's32[2]{0}', space=sflag, size = 0x8, scoped, tag = 'scoped memory for tpu_custom_call.1']
    #allocation6 [shape = 'u8[1835008]{0}', space=vmem, size = 0x1c0000, scoped, tag = 'output window, operand 0']
    %8 = vsyncpa [#allocation4], 0
    %s9 = scalar_lea.sflag [#allocation4], 1
    %10 = vsyncpa %s9, 0
    %11 = vsyncpa [#allocation5], 0
    %s12 = scalar_lea.sflag [#allocation5], 1
    %13 = vsyncpa %s12, 0
    loop: start=0, step=1, limit=6
    $region2: #{tpu_custom_call.1} parent=1 // loop_pre_header
      _
    $region3: #{tpu_custom_call.1} parent=1 // loop_header
      %s15 = sphi 0, %s19
      %p16 = scmp.ge.s32.totalorder %s15, 6
      %s23 = sphi 0, %s23
      %s25 = sphi 0, %s23
      %s26 = sphi 0, %s25
      %s40 = sphi 0, %s26
      %s46 = sphi 0, %s48
      %s49 = sphi 0, %s46
      %s50 = sphi 0, %s49
      %s66 = sphi 0, %s50
      %s72 = sphi 0, %s74
      %s75 = sphi 0, %s72
      %s76 = sphi 0, %s75
      %s92 = sphi 0, %s76
    $region4: #{tpu_custom_call.1} parent=1 // loop_header_branch
      %18 = sbr.rel (%p16) target = $region8
    $region5: #{tpu_custom_call.1} parent=1 // loop_body
      %s20 = ssub.s32 %s15, 1
      %s21 = ssub.s32 %s15, 2
      %s22 = sadd.s32 %s15, 1
      %s24 = sadd.s32 %s23, 1
      %p27 = scmp.eq.s32.totalorder %s15, 3
      %p28 = scmp.ne.s32.totalorder %s23, %s25
      %p29 = scmp.eq.s32.totalorder %s15, 0
      %p30 = por %p28, %p29
      %p31 = scmp.ne.s32.totalorder %s23, %s25
      %p32 = scmp.eq.s32.totalorder %s20, 3
      %p33 = por %p31, %p32
      %p34 = scmp.ne.s32.totalorder %s25, %s26
      %p35 = scmp.eq.s32.totalorder %s20, 0
      %p36 = por %p34, %p35
      %p37 = scmp.ne.s32.totalorder %s25, %s26
      %p38 = scmp.eq.s32.totalorder %s21, 3
      %p39 = por %p37, %p38
      %p41 = scmp.ne.s32.totalorder %s26, %s40
      %p42 = scmp.eq.s32.totalorder %s21, 0
      %p43 = por %p41, %p42
      %s44 = ssub.s32 %s15, %s22
      %p45 = scmp.eq.s32.totalorder %s44, 0
      %s47 = sadd.s32 %s46, 1
      %s48 = scalar_select %p45, %s46, %s47
      %p51 = pneg %p45
      %p52 = scmp.eq.s32.totalorder %s15, 3
      %p53 = por %p51, %p52
      %p54 = scmp.ne.s32.totalorder %s46, %s49
      %p55 = scmp.eq.s32.totalorder %s15, 0
      %p56 = por %p54, %p55
      %p57 = scmp.ne.s32.totalorder %s46, %s49
      %p58 = scmp.eq.s32.totalorder %s20, 3
      %p59 = por %p57, %p58
      %p60 = scmp.ne.s32.totalorder %s49, %s50
      %p61 = scmp.eq.s32.totalorder %s20, 0
      %p62 = por %p60, %p61
      %p63 = scmp.ne.s32.totalorder %s49, %s50
      %p64 = scmp.eq.s32.totalorder %s21, 3
      %p65 = por %p63, %p64
      %p67 = scmp.ne.s32.totalorder %s50, %s66
      %p68 = scmp.eq.s32.totalorder %s21, 0
      %p69 = por %p67, %p68
      %s70 = ssub.s32 %s15, %s22
      %p71 = scmp.eq.s32.totalorder %s70, 0
      %s73 = sadd.s32 %s72, 1
      %s74 = scalar_select %p71, %s72, %s73
      %p77 = pneg %p71
      %p78 = scmp.eq.s32.totalorder %s15, 3
      %p79 = por %p77, %p78
      %p80 = scmp.ne.s32.totalorder %s72, %s75
      %p81 = scmp.eq.s32.totalorder %s15, 0
      %p82 = por %p80, %p81
      %p83 = scmp.ne.s32.totalorder %s72, %s75
      %p84 = scmp.eq.s32.totalorder %s20, 3
      %p85 = por %p83, %p84
      %p86 = scmp.ne.s32.totalorder %s75, %s76
      %p87 = scmp.eq.s32.totalorder %s20, 0
      %p88 = por %p86, %p87
      %p89 = scmp.ne.s32.totalorder %s75, %s76
      %p90 = scmp.eq.s32.totalorder %s21, 3
      %p91 = por %p89, %p90
      %p93 = scmp.ne.s32.totalorder %s76, %s92
      %p94 = scmp.eq.s32.totalorder %s21, 0
      %p95 = por %p93, %p94
      %p96 = scmp.le.s32.totalorder 1, %s15
      %p97 = scmp.lt.s32.totalorder %s15, 5
      %p98 = pnand %p96, %p97
      %p99 = pneg %p98
      // Predicated region
      $region9: #{tpu_custom_call.1} parent=5 // pred_check
        _
      $region10: #{tpu_custom_call.1} parent=5 // pred_check_branch
        %101 = sbr.rel (%p98) target = $region12
      $region11: #{tpu_custom_call.1} parent=5 // pred_region
        %s102 = ssub.s32 %s15, 1
        // Predicated region
        $region13: #{tpu_custom_call.1} parent=11 // pred_check
          %p103 = pneg %p36
        $region14: #{tpu_custom_call.1} parent=11 // pred_check_branch
          %105 = sbr.rel (%p103) target = $region16
        $region15: #{tpu_custom_call.1} parent=11 // pred_region
          _
        $region16: #{tpu_custom_call.1} parent=11 // pred_fallthru
          _
      $region12: #{tpu_custom_call.1} parent=5 // pred_fallthru
        _
      %p106 = scmp.lt.s32.totalorder %s15, 4
      // Predicated region
      $region17: #{tpu_custom_call.1} parent=5 // pred_check
        %p107 = pneg %p106
      $region18: #{tpu_custom_call.1} parent=5 // pred_check_branch
        %109 = sbr.rel (%p107) target = $region20
      $region19: #{tpu_custom_call.1} parent=5 // pred_region
        // Predicated region
        $region21: #{tpu_custom_call.1} parent=19 // pred_check
          %p110 = pneg %p56
        $region22: #{tpu_custom_call.1} parent=19 // pred_check_branch
          %112 = sbr.rel (%p110) target = $region24
        $region23: #{tpu_custom_call.1} parent=19 // pred_region
          %s113 = sand.u32 %s46, 1
          %s114 = scalar_lea.sflag [#allocation4], %s113
          %s115 = sand.u32 %s46, 1
          %s116 = smul.addr %s115, 1792
          %s117 = scalar_lea.vmem [#allocation3], %s116
          %s118 = smul.u32 28, %s15
          %s119 = ssub.s32 111, %s118
          %p120 = scmp.lt.s32.totalorder %s119, 28
          %s121 = scalar_select %p120, %s119, 28
          %s122 = smul.u32 128, %s121
          %s123 = smul.u32 %s122, 8
          %s125 = ssub.s32 28672, %s123
          %126 = vsyncadd %s114, %s125
          %p127 = scmp.ne.s32.totalorder 0, %s123
          %s128 = smul.addr %s118, 8
          %s129 = smul.addr %s128, 128
          %s130 = scalar_lea.hbm %s1, %s129
          %s131 = smul.u32 64, %s121
          %s132 = sshll.u32 %s117, 4
          %s133 = int_to_ptr.vmem [resolvable:$true] %s132
          %s134 = sshll.u32 %s131, 4
          %138 = dma.hbm_to_vmem [thread:$0]  (%p127), %s130, %s134, %s133, %s114, 1024, 1024, 64
        $region24: #{tpu_custom_call.1} parent=19 // pred_fallthru
          _
      $region20: #{tpu_custom_call.1} parent=5 // pred_fallthru
        _
      %p139 = scmp.le.s32.totalorder 1, %s15
      %p140 = scmp.lt.s32.totalorder %s15, 5
      %p141 = pnand %p139, %p140
      %p142 = pneg %p141
      // Predicated region
      $region25: #{tpu_custom_call.1} parent=5 // pred_check
        _
      $region26: #{tpu_custom_call.1} parent=5 // pred_check_branch
        %144 = sbr.rel (%p141) target = $region28
      $region27: #{tpu_custom_call.1} parent=5 // pred_region
        %s145 = ssub.s32 %s15, 1
        %s146 = sand.u32 %s49, 1
        %s147 = scalar_lea.sflag [#allocation4], %s146
        %s148 = sand.u32 %s49, 1
        %s149 = smul.addr %s148, 1792
        %s150 = scalar_lea.vmem [#allocation3], %s149
        // Predicated region
        $region29: #{tpu_custom_call.1} parent=27 // pred_check
          %p151 = pneg %p62
        $region30: #{tpu_custom_call.1} parent=27 // pred_check_branch
          %153 = sbr.rel (%p151) target = $region32
        $region31: #{tpu_custom_call.1} parent=27 // pred_region
          %154 = dma.done %s147, 28672
        $region32: #{tpu_custom_call.1} parent=27 // pred_fallthru
          _
        %p155 = pneg %p36
        %p156 = pneg %p33
        %s157 = sand.u32 %s49, 1
        %s158 = scalar_lea.sflag [#allocation4], %s157
        %s159 = sand.u32 %s49, 1
        %s160 = smul.addr %s159, 1792
        %s161 = scalar_lea.vmem [#allocation3], %s160
        %p162 = pneg %p62
        %p163 = pneg %p59
        %p164 = pneg %p88
        %p165 = pneg %p85
        %s166 = sand.u32 %s75, 1
        %s167 = scalar_lea.sflag [#allocation5], %s166
        %s168 = sand.u32 %s75, 1
        %s169 = smul.addr %s168, 1792
        %s170 = scalar_lea.vmem [#allocation6], %s169
        %s171 = smul.u32 28, %s20
        %s172 = ssub.s32 111, %s171
        %p173 = scmp.lt.s32.totalorder %s172, 28
        %s174 = scalar_select %p173, %s172, 28
        %s175 = smul.u32 128, %s174
        %s176 = smul.u32 %s175, 8
        %s177 = smul.u32 28, %s20
        %s178 = ssub.s32 111, %s177
        %p179 = scmp.lt.s32.totalorder %s178, 28
        %s180 = scalar_select %p179, %s178, 28
        %s181 = smul.u32 128, %s180
        %s182 = smul.u32 %s181, 8
        %s183 = sld [smem:[#allocation2]]
        %s184 = smax.f32 %s183, 0.0
        %s185 = smin.f32 %s184, 1.0
        %v186 = vld [vmem:[%s150] sm:$0xff]
        %v187 = vld [vmem:[%s150 + $0x8] sm:$0xff]
        %v188 = vld [vmem:[%s150 + $0x10] sm:$0xff]
        %v189 = vld [vmem:[%s150 + $0x18] sm:$0xff]
        %v190 = vld [vmem:[%s150 + $0x20] sm:$0xff]
        %v191 = vld [vmem:[%s150 + $0x28] sm:$0xff]
        %v192 = vld [vmem:[%s150 + $0x30] sm:$0xff]
        %v193 = vld [vmem:[%s150 + $0x38] sm:$0xff]
        %v194 = vld [vmem:[%s150 + $0x40] sm:$0xff]
        %v195 = vld [vmem:[%s150 + $0x48] sm:$0xff]
        %v196 = vld [vmem:[%s150 + $0x50] sm:$0xff]
        %v197 = vld [vmem:[%s150 + $0x58] sm:$0xff]
        %v198 = vld [vmem:[%s150 + $0x60] sm:$0xff]
        %v199 = vld [vmem:[%s150 + $0x68] sm:$0xff]
        %v200 = vld [vmem:[%s150 + $0x70] sm:$0xff]
        %v201 = vld [vmem:[%s150 + $0x78] sm:$0xff]
        %v202 = vld [vmem:[%s150 + $0x80] sm:$0xff]
        %v203 = vld [vmem:[%s150 + $0x88] sm:$0xff]
        %v204 = vld [vmem:[%s150 + $0x90] sm:$0xff]
        %v205 = vld [vmem:[%s150 + $0x98] sm:$0xff]
        %v206 = vld [vmem:[%s150 + $0xa0] sm:$0xff]
        %v207 = vld [vmem:[%s150 + $0xa8] sm:$0xff]
        %v208 = vld [vmem:[%s150 + $0xb0] sm:$0xff]
        %v209 = vld [vmem:[%s150 + $0xb8] sm:$0xff]
        %v210 = vld [vmem:[%s150 + $0xc0] sm:$0xff]
        %v211 = vld [vmem:[%s150 + $0xc8] sm:$0xff]
        %v212 = vld [vmem:[%s150 + $0xd0] sm:$0xff]
        %v213 = vld [vmem:[%s150 + $0xd8] sm:$0xff]
        %v214 = vld [vmem:[%s150 + $0xe0] sm:$0xff]
        %v215 = vld [vmem:[%s150 + $0xe8] sm:$0xff]
        %v216 = vld [vmem:[%s150 + $0xf0] sm:$0xff]
        %v217 = vld [vmem:[%s150 + $0xf8] sm:$0xff]
        %v218 = vld [vmem:[%s150 + $0x100] sm:$0xff]
        %v219 = vld [vmem:[%s150 + $0x108] sm:$0xff]
        %v220 = vld [vmem:[%s150 + $0x110] sm:$0xff]
        %v221 = vld [vmem:[%s150 + $0x118] sm:$0xff]
        %v222 = vld [vmem:[%s150 + $0x120] sm:$0xff]
        %v223 = vld [vmem:[%s150 + $0x128] sm:$0xff]
        %v224 = vld [vmem:[%s150 + $0x130] sm:$0xff]
        %v225 = vld [vmem:[%s150 + $0x138] sm:$0xff]
        %v226 = vld [vmem:[%s150 + $0x140] sm:$0xff]
        %v227 = vld [vmem:[%s150 + $0x148] sm:$0xff]
        %v228 = vld [vmem:[%s150 + $0x150] sm:$0xff]
        %v229 = vld [vmem:[%s150 + $0x158] sm:$0xff]
        %v230 = vld [vmem:[%s150 + $0x160] sm:$0xff]
        %v231 = vld [vmem:[%s150 + $0x168] sm:$0xff]
        %v232 = vld [vmem:[%s150 + $0x170] sm:$0xff]
        %v233 = vld [vmem:[%s150 + $0x178] sm:$0xff]
        %v234 = vld [vmem:[%s150 + $0x180] sm:$0xff]
        %v235 = vld [vmem:[%s150 + $0x188] sm:$0xff]
        %v236 = vld [vmem:[%s150 + $0x190] sm:$0xff]
        %v237 = vld [vmem:[%s150 + $0x198] sm:$0xff]
        %v238 = vld [vmem:[%s150 + $0x1a0] sm:$0xff]
        %v239 = vld [vmem:[%s150 + $0x1a8] sm:$0xff]
        %v240 = vld [vmem:[%s150 + $0x1b0] sm:$0xff]
        %v241 = vld [vmem:[%s150 + $0x1b8] sm:$0xff]
        %v242 = vld [vmem:[%s150 + $0x1c0] sm:$0xff]
        %v243 = vld [vmem:[%s150 + $0x1c8] sm:$0xff]
        %v244 = vld [vmem:[%s150 + $0x1d0] sm:$0xff]
        %v245 = vld [vmem:[%s150 + $0x1d8] sm:$0xff]
        %v246 = vld [vmem:[%s150 + $0x1e0] sm:$0xff]
        %v247 = vld [vmem:[%s150 + $0x1e8] sm:$0xff]
        %v248 = vld [vmem:[%s150 + $0x1f0] sm:$0xff]
        %v249 = vld [vmem:[%s150 + $0x1f8] sm:$0xff]
        %v250 = vld [vmem:[%s150 + $0x200] sm:$0xff]
        %v251 = vld [vmem:[%s150 + $0x208] sm:$0xff]
        %v252 = vld [vmem:[%s150 + $0x210] sm:$0xff]
        %v253 = vld [vmem:[%s150 + $0x218] sm:$0xff]
        %v254 = vld [vmem:[%s150 + $0x220] sm:$0xff]
        %v255 = vld [vmem:[%s150 + $0x228] sm:$0xff]
        %v256 = vld [vmem:[%s150 + $0x230] sm:$0xff]
        %v257 = vld [vmem:[%s150 + $0x238] sm:$0xff]
        %v258 = vld [vmem:[%s150 + $0x240] sm:$0xff]
        %v259 = vld [vmem:[%s150 + $0x248] sm:$0xff]
        %v260 = vld [vmem:[%s150 + $0x250] sm:$0xff]
        %v261 = vld [vmem:[%s150 + $0x258] sm:$0xff]
        %v262 = vld [vmem:[%s150 + $0x260] sm:$0xff]
        %v263 = vld [vmem:[%s150 + $0x268] sm:$0xff]
        %v264 = vld [vmem:[%s150 + $0x270] sm:$0xff]
        %v265 = vld [vmem:[%s150 + $0x278] sm:$0xff]
        %v266 = vld [vmem:[%s150 + $0x280] sm:$0xff]
        %v267 = vld [vmem:[%s150 + $0x288] sm:$0xff]
        %v268 = vld [vmem:[%s150 + $0x290] sm:$0xff]
        %v269 = vld [vmem:[%s150 + $0x298] sm:$0xff]
        %v270 = vld [vmem:[%s150 + $0x2a0] sm:$0xff]
        %v271 = vld [vmem:[%s150 + $0x2a8] sm:$0xff]
        %v272 = vld [vmem:[%s150 + $0x2b0] sm:$0xff]
        %v273 = vld [vmem:[%s150 + $0x2b8] sm:$0xff]
        %v274 = vld [vmem:[%s150 + $0x2c0] sm:$0xff]
        %v275 = vld [vmem:[%s150 + $0x2c8] sm:$0xff]
        %v276 = vld [vmem:[%s150 + $0x2d0] sm:$0xff]
        %v277 = vld [vmem:[%s150 + $0x2d8] sm:$0xff]
        %v278 = vld [vmem:[%s150 + $0x2e0] sm:$0xff]
        %v279 = vld [vmem:[%s150 + $0x2e8] sm:$0xff]
        %v280 = vld [vmem:[%s150 + $0x2f0] sm:$0xff]
        %v281 = vld [vmem:[%s150 + $0x2f8] sm:$0xff]
        %v282 = vld [vmem:[%s150 + $0x300] sm:$0xff]
        %v283 = vld [vmem:[%s150 + $0x308] sm:$0xff]
        %v284 = vld [vmem:[%s150 + $0x310] sm:$0xff]
        %v285 = vld [vmem:[%s150 + $0x318] sm:$0xff]
        %v286 = vld [vmem:[%s150 + $0x320] sm:$0xff]
        %v287 = vld [vmem:[%s150 + $0x328] sm:$0xff]
        %v288 = vld [vmem:[%s150 + $0x330] sm:$0xff]
        %v289 = vld [vmem:[%s150 + $0x338] sm:$0xff]
        %v290 = vld [vmem:[%s150 + $0x340] sm:$0xff]
        %v291 = vld [vmem:[%s150 + $0x348] sm:$0xff]
        %v292 = vld [vmem:[%s150 + $0x350] sm:$0xff]
        %v293 = vld [vmem:[%s150 + $0x358] sm:$0xff]
        %v294 = vld [vmem:[%s150 + $0x360] sm:$0xff]
        %v295 = vld [vmem:[%s150 + $0x368] sm:$0xff]
        %v296 = vld [vmem:[%s150 + $0x370] sm:$0xff]
        %v297 = vld [vmem:[%s150 + $0x378] sm:$0xff]
        %v298 = vld [vmem:[%s150 + $0x380] sm:$0xff]
        %v299 = vld [vmem:[%s150 + $0x388] sm:$0xff]
        %v300 = vld [vmem:[%s150 + $0x390] sm:$0xff]
        %v301 = vld [vmem:[%s150 + $0x398] sm:$0xff]
        %v302 = vld [vmem:[%s150 + $0x3a0] sm:$0xff]
        %v303 = vld [vmem:[%s150 + $0x3a8] sm:$0xff]
        %v304 = vld [vmem:[%s150 + $0x3b0] sm:$0xff]
        %v305 = vld [vmem:[%s150 + $0x3b8] sm:$0xff]
        %v306 = vld [vmem:[%s150 + $0x3c0] sm:$0xff]
        %v307 = vld [vmem:[%s150 + $0x3c8] sm:$0xff]
        %v308 = vld [vmem:[%s150 + $0x3d0] sm:$0xff]
        %v309 = vld [vmem:[%s150 + $0x3d8] sm:$0xff]
        %v310 = vld [vmem:[%s150 + $0x3e0] sm:$0xff]
        %v311 = vld [vmem:[%s150 + $0x3e8] sm:$0xff]
        %v312 = vld [vmem:[%s150 + $0x3f0] sm:$0xff]
        %v313 = vld [vmem:[%s150 + $0x3f8] sm:$0xff]
        %v314 = vld [vmem:[%s150 + $0x400] sm:$0xff]
        %v315 = vld [vmem:[%s150 + $0x408] sm:$0xff]
        %v316 = vld [vmem:[%s150 + $0x410] sm:$0xff]
        %v317 = vld [vmem:[%s150 + $0x418] sm:$0xff]
        %v318 = vld [vmem:[%s150 + $0x420] sm:$0xff]
        %v319 = vld [vmem:[%s150 + $0x428] sm:$0xff]
        %v320 = vld [vmem:[%s150 + $0x430] sm:$0xff]
        %v321 = vld [vmem:[%s150 + $0x438] sm:$0xff]
        %v322 = vld [vmem:[%s150 + $0x440] sm:$0xff]
        %v323 = vld [vmem:[%s150 + $0x448] sm:$0xff]
        %v324 = vld [vmem:[%s150 + $0x450] sm:$0xff]
        %v325 = vld [vmem:[%s150 + $0x458] sm:$0xff]
        %v326 = vld [vmem:[%s150 + $0x460] sm:$0xff]
        %v327 = vld [vmem:[%s150 + $0x468] sm:$0xff]
        %v328 = vld [vmem:[%s150 + $0x470] sm:$0xff]
        %v329 = vld [vmem:[%s150 + $0x478] sm:$0xff]
        %v330 = vld [vmem:[%s150 + $0x480] sm:$0xff]
        %v331 = vld [vmem:[%s150 + $0x488] sm:$0xff]
        %v332 = vld [vmem:[%s150 + $0x490] sm:$0xff]
        %v333 = vld [vmem:[%s150 + $0x498] sm:$0xff]
        %v334 = vld [vmem:[%s150 + $0x4a0] sm:$0xff]
        %v335 = vld [vmem:[%s150 + $0x4a8] sm:$0xff]
        %v336 = vld [vmem:[%s150 + $0x4b0] sm:$0xff]
        %v337 = vld [vmem:[%s150 + $0x4b8] sm:$0xff]
        %v338 = vld [vmem:[%s150 + $0x4c0] sm:$0xff]
        %v339 = vld [vmem:[%s150 + $0x4c8] sm:$0xff]
        %v340 = vld [vmem:[%s150 + $0x4d0] sm:$0xff]
        %v341 = vld [vmem:[%s150 + $0x4d8] sm:$0xff]
        %v342 = vld [vmem:[%s150 + $0x4e0] sm:$0xff]
        %v343 = vld [vmem:[%s150 + $0x4e8] sm:$0xff]
        %v344 = vld [vmem:[%s150 + $0x4f0] sm:$0xff]
        %v345 = vld [vmem:[%s150 + $0x4f8] sm:$0xff]
        %v346 = vld [vmem:[%s150 + $0x500] sm:$0xff]
        %v347 = vld [vmem:[%s150 + $0x508] sm:$0xff]
        %v348 = vld [vmem:[%s150 + $0x510] sm:$0xff]
        %v349 = vld [vmem:[%s150 + $0x518] sm:$0xff]
        %v350 = vld [vmem:[%s150 + $0x520] sm:$0xff]
        %v351 = vld [vmem:[%s150 + $0x528] sm:$0xff]
        %v352 = vld [vmem:[%s150 + $0x530] sm:$0xff]
        %v353 = vld [vmem:[%s150 + $0x538] sm:$0xff]
        %v354 = vld [vmem:[%s150 + $0x540] sm:$0xff]
        %v355 = vld [vmem:[%s150 + $0x548] sm:$0xff]
        %v356 = vld [vmem:[%s150 + $0x550] sm:$0xff]
        %v357 = vld [vmem:[%s150 + $0x558] sm:$0xff]
        %v358 = vld [vmem:[%s150 + $0x560] sm:$0xff]
        %v359 = vld [vmem:[%s150 + $0x568] sm:$0xff]
        %v360 = vld [vmem:[%s150 + $0x570] sm:$0xff]
        %v361 = vld [vmem:[%s150 + $0x578] sm:$0xff]
        %v362 = vld [vmem:[%s150 + $0x580] sm:$0xff]
        %v363 = vld [vmem:[%s150 + $0x588] sm:$0xff]
        %v364 = vld [vmem:[%s150 + $0x590] sm:$0xff]
        %v365 = vld [vmem:[%s150 + $0x598] sm:$0xff]
        %v366 = vld [vmem:[%s150 + $0x5a0] sm:$0xff]
        %v367 = vld [vmem:[%s150 + $0x5a8] sm:$0xff]
        %v368 = vld [vmem:[%s150 + $0x5b0] sm:$0xff]
        %v369 = vld [vmem:[%s150 + $0x5b8] sm:$0xff]
        %v370 = vld [vmem:[%s150 + $0x5c0] sm:$0xff]
        %v371 = vld [vmem:[%s150 + $0x5c8] sm:$0xff]
        %v372 = vld [vmem:[%s150 + $0x5d0] sm:$0xff]
        %v373 = vld [vmem:[%s150 + $0x5d8] sm:$0xff]
        %v374 = vld [vmem:[%s150 + $0x5e0] sm:$0xff]
        %v375 = vld [vmem:[%s150 + $0x5e8] sm:$0xff]
        %v376 = vld [vmem:[%s150 + $0x5f0] sm:$0xff]
        %v377 = vld [vmem:[%s150 + $0x5f8] sm:$0xff]
        %v378 = vld [vmem:[%s150 + $0x600] sm:$0xff]
        %v379 = vld [vmem:[%s150 + $0x608] sm:$0xff]
        %v380 = vld [vmem:[%s150 + $0x610] sm:$0xff]
        %v381 = vld [vmem:[%s150 + $0x618] sm:$0xff]
        %v382 = vld [vmem:[%s150 + $0x620] sm:$0xff]
        %v383 = vld [vmem:[%s150 + $0x628] sm:$0xff]
        %v384 = vld [vmem:[%s150 + $0x630] sm:$0xff]
        %v385 = vld [vmem:[%s150 + $0x638] sm:$0xff]
        %v386 = vld [vmem:[%s150 + $0x640] sm:$0xff]
        %v387 = vld [vmem:[%s150 + $0x648] sm:$0xff]
        %v388 = vld [vmem:[%s150 + $0x650] sm:$0xff]
        %v389 = vld [vmem:[%s150 + $0x658] sm:$0xff]
        %v390 = vld [vmem:[%s150 + $0x660] sm:$0xff]
        %v391 = vld [vmem:[%s150 + $0x668] sm:$0xff]
        %v392 = vld [vmem:[%s150 + $0x670] sm:$0xff]
        %v393 = vld [vmem:[%s150 + $0x678] sm:$0xff]
        %v394 = vld [vmem:[%s150 + $0x680] sm:$0xff]
        %v395 = vld [vmem:[%s150 + $0x688] sm:$0xff]
        %v396 = vld [vmem:[%s150 + $0x690] sm:$0xff]
        %v397 = vld [vmem:[%s150 + $0x698] sm:$0xff]
        %v398 = vld [vmem:[%s150 + $0x6a0] sm:$0xff]
        %v399 = vld [vmem:[%s150 + $0x6a8] sm:$0xff]
        %v400 = vld [vmem:[%s150 + $0x6b0] sm:$0xff]
        %v401 = vld [vmem:[%s150 + $0x6b8] sm:$0xff]
        %v402 = vld [vmem:[%s150 + $0x6c0] sm:$0xff]
        %v403 = vld [vmem:[%s150 + $0x6c8] sm:$0xff]
        %v404 = vld [vmem:[%s150 + $0x6d0] sm:$0xff]
        %v405 = vld [vmem:[%s150 + $0x6d8] sm:$0xff]
        %v406 = vld [vmem:[%s150 + $0x6e0] sm:$0xff]
        %v407 = vld [vmem:[%s150 + $0x6e8] sm:$0xff]
        %v408 = vld [vmem:[%s150 + $0x6f0] sm:$0xff]
        %v409 = vld [vmem:[%s150 + $0x6f8] sm:$0xff]
        %v410 = vstv %s185
        %v411 = vadd.f32 %v186, %v410
        %v412 = vadd.f32 %v187, %v410
        %v413 = vadd.f32 %v188, %v410
        %v414 = vadd.f32 %v189, %v410
        %v415 = vadd.f32 %v190, %v410
        %v416 = vadd.f32 %v191, %v410
        %v417 = vadd.f32 %v192, %v410
        %v418 = vadd.f32 %v193, %v410
        %v419 = vadd.f32 %v194, %v410
        %v420 = vadd.f32 %v195, %v410
        %v421 = vadd.f32 %v196, %v410
        %v422 = vadd.f32 %v197, %v410
        %v423 = vadd.f32 %v198, %v410
        %v424 = vadd.f32 %v199, %v410
        %v425 = vadd.f32 %v200, %v410
        %v426 = vadd.f32 %v201, %v410
        %v427 = vadd.f32 %v202, %v410
        %v428 = vadd.f32 %v203, %v410
        %v429 = vadd.f32 %v204, %v410
        %v430 = vadd.f32 %v205, %v410
        %v431 = vadd.f32 %v206, %v410
        %v432 = vadd.f32 %v207, %v410
        %v433 = vadd.f32 %v208, %v410
        %v434 = vadd.f32 %v209, %v410
        %v435 = vadd.f32 %v210, %v410
        %v436 = vadd.f32 %v211, %v410
        %v437 = vadd.f32 %v212, %v410
        %v438 = vadd.f32 %v213, %v410
        %v439 = vadd.f32 %v214, %v410
        %v440 = vadd.f32 %v215, %v410
        %v441 = vadd.f32 %v216, %v410
        %v442 = vadd.f32 %v217, %v410
        %v443 = vadd.f32 %v218, %v410
        %v444 = vadd.f32 %v219, %v410
        %v445 = vadd.f32 %v220, %v410
        %v446 = vadd.f32 %v221, %v410
        %v447 = vadd.f32 %v222, %v410
        %v448 = vadd.f32 %v223, %v410
        %v449 = vadd.f32 %v224, %v410
        %v450 = vadd.f32 %v225, %v410
        %v451 = vadd.f32 %v226, %v410
        %v452 = vadd.f32 %v227, %v410
        %v453 = vadd.f32 %v228, %v410
        %v454 = vadd.f32 %v229, %v410
        %v455 = vadd.f32 %v230, %v410
        %v456 = vadd.f32 %v231, %v410
        %v457 = vadd.f32 %v232, %v410
        %v458 = vadd.f32 %v233, %v410
        %v459 = vadd.f32 %v234, %v410
        %v460 = vadd.f32 %v235, %v410
        %v461 = vadd.f32 %v236, %v410
        %v462 = vadd.f32 %v237, %v410
        %v463 = vadd.f32 %v238, %v410
        %v464 = vadd.f32 %v239, %v410
        %v465 = vadd.f32 %v240, %v410
        %v466 = vadd.f32 %v241, %v410
        %v467 = vadd.f32 %v242, %v410
        %v468 = vadd.f32 %v243, %v410
        %v469 = vadd.f32 %v244, %v410
        %v470 = vadd.f32 %v245, %v410
        %v471 = vadd.f32 %v246, %v410
        %v472 = vadd.f32 %v247, %v410
        %v473 = vadd.f32 %v248, %v410
        %v474 = vadd.f32 %v249, %v410
        %v475 = vadd.f32 %v250, %v410
        %v476 = vadd.f32 %v251, %v410
        %v477 = vadd.f32 %v252, %v410
        %v478 = vadd.f32 %v253, %v410
        %v479 = vadd.f32 %v254, %v410
        %v480 = vadd.f32 %v255, %v410
        %v481 = vadd.f32 %v256, %v410
        %v482 = vadd.f32 %v257, %v410
        %v483 = vadd.f32 %v258, %v410
        %v484 = vadd.f32 %v259, %v410
        %v485 = vadd.f32 %v260, %v410
        %v486 = vadd.f32 %v261, %v410
        %v487 = vadd.f32 %v262, %v410
        %v488 = vadd.f32 %v263, %v410
        %v489 = vadd.f32 %v264, %v410
        %v490 = vadd.f32 %v265, %v410
        %v491 = vadd.f32 %v266, %v410
        %v492 = vadd.f32 %v267, %v410
        %v493 = vadd.f32 %v268, %v410
        %v494 = vadd.f32 %v269, %v410
        %v495 = vadd.f32 %v270, %v410
        %v496 = vadd.f32 %v271, %v410
        %v497 = vadd.f32 %v272, %v410
        %v498 = vadd.f32 %v273, %v410
        %v499 = vadd.f32 %v274, %v410
        %v500 = vadd.f32 %v275, %v410
        %v501 = vadd.f32 %v276, %v410
        %v502 = vadd.f32 %v277, %v410
        %v503 = vadd.f32 %v278, %v410
        %v504 = vadd.f32 %v279, %v410
        %v505 = vadd.f32 %v280, %v410
        %v506 = vadd.f32 %v281, %v410
        %v507 = vadd.f32 %v282, %v410
        %v508 = vadd.f32 %v283, %v410
        %v509 = vadd.f32 %v284, %v410
        %v510 = vadd.f32 %v285, %v410
        %v511 = vadd.f32 %v286, %v410
        %v512 = vadd.f32 %v287, %v410
        %v513 = vadd.f32 %v288, %v410
        %v514 = vadd.f32 %v289, %v410
        %v515 = vadd.f32 %v290, %v410
        %v516 = vadd.f32 %v291, %v410
        %v517 = vadd.f32 %v292, %v410
        %v518 = vadd.f32 %v293, %v410
        %v519 = vadd.f32 %v294, %v410
        %v520 = vadd.f32 %v295, %v410
        %v521 = vadd.f32 %v296, %v410
        %v522 = vadd.f32 %v297, %v410
        %v523 = vadd.f32 %v298, %v410
        %v524 = vadd.f32 %v299, %v410
        %v525 = vadd.f32 %v300, %v410
        %v526 = vadd.f32 %v301, %v410
        %v527 = vadd.f32 %v302, %v410
        %v528 = vadd.f32 %v303, %v410
        %v529 = vadd.f32 %v304, %v410
        %v530 = vadd.f32 %v305, %v410
        %v531 = vadd.f32 %v306, %v410
        %v532 = vadd.f32 %v307, %v410
        %v533 = vadd.f32 %v308, %v410
        %v534 = vadd.f32 %v309, %v410
        %v535 = vadd.f32 %v310, %v410
        %v536 = vadd.f32 %v311, %v410
        %v537 = vadd.f32 %v312, %v410
        %v538 = vadd.f32 %v313, %v410
        %v539 = vadd.f32 %v314, %v410
        %v540 = vadd.f32 %v315, %v410
        %v541 = vadd.f32 %v316, %v410
        %v542 = vadd.f32 %v317, %v410
        %v543 = vadd.f32 %v318, %v410
        %v544 = vadd.f32 %v319, %v410
        %v545 = vadd.f32 %v320, %v410
        %v546 = vadd.f32 %v321, %v410
        %v547 = vadd.f32 %v322, %v410
        %v548 = vadd.f32 %v323, %v410
        %v549 = vadd.f32 %v324, %v410
        %v550 = vadd.f32 %v325, %v410
        %v551 = vadd.f32 %v326, %v410
        %v552 = vadd.f32 %v327, %v410
        %v553 = vadd.f32 %v328, %v410
        %v554 = vadd.f32 %v329, %v410
        %v555 = vadd.f32 %v330, %v410
        %v556 = vadd.f32 %v331, %v410
        %v557 = vadd.f32 %v332, %v410
        %v558 = vadd.f32 %v333, %v410
        %v559 = vadd.f32 %v334, %v410
        %v560 = vadd.f32 %v335, %v410
        %v561 = vadd.f32 %v336, %v410
        %v562 = vadd.f32 %v337, %v410
        %v563 = vadd.f32 %v338, %v410
        %v564 = vadd.f32 %v339, %v410
        %v565 = vadd.f32 %v340, %v410
        %v566 = vadd.f32 %v341, %v410
        %v567 = vadd.f32 %v342, %v410
        %v568 = vadd.f32 %v343, %v410
        %v569 = vadd.f32 %v344, %v410
        %v570 = vadd.f32 %v345, %v410
        %v571 = vadd.f32 %v346, %v410
        %v572 = vadd.f32 %v347, %v410
        %v573 = vadd.f32 %v348, %v410
        %v574 = vadd.f32 %v349, %v410
        %v575 = vadd.f32 %v350, %v410
        %v576 = vadd.f32 %v351, %v410
        %v577 = vadd.f32 %v352, %v410
        %v578 = vadd.f32 %v353, %v410
        %v579 = vadd.f32 %v354, %v410
        %v580 = vadd.f32 %v355, %v410
        %v581 = vadd.f32 %v356, %v410
        %v582 = vadd.f32 %v357, %v410
        %v583 = vadd.f32 %v358, %v410
        %v584 = vadd.f32 %v359, %v410
        %v585 = vadd.f32 %v360, %v410
        %v586 = vadd.f32 %v361, %v410
        %v587 = vadd.f32 %v362, %v410
        %v588 = vadd.f32 %v363, %v410
        %v589 = vadd.f32 %v364, %v410
        %v590 = vadd.f32 %v365, %v410
        %v591 = vadd.f32 %v366, %v410
        %v592 = vadd.f32 %v367, %v410
        %v593 = vadd.f32 %v368, %v410
        %v594 = vadd.f32 %v369, %v410
        %v595 = vadd.f32 %v370, %v410
        %v596 = vadd.f32 %v371, %v410
        %v597 = vadd.f32 %v372, %v410
        %v598 = vadd.f32 %v373, %v410
        %v599 = vadd.f32 %v374, %v410
        %v600 = vadd.f32 %v375, %v410
        %v601 = vadd.f32 %v376, %v410
        %v602 = vadd.f32 %v377, %v410
        %v603 = vadd.f32 %v378, %v410
        %v604 = vadd.f32 %v379, %v410
        %v605 = vadd.f32 %v380, %v410
        %v606 = vadd.f32 %v381, %v410
        %v607 = vadd.f32 %v382, %v410
        %v608 = vadd.f32 %v383, %v410
        %v609 = vadd.f32 %v384, %v410
        %v610 = vadd.f32 %v385, %v410
        %v611 = vadd.f32 %v386, %v410
        %v612 = vadd.f32 %v387, %v410
        %v613 = vadd.f32 %v388, %v410
        %v614 = vadd.f32 %v389, %v410
        %v615 = vadd.f32 %v390, %v410
        %v616 = vadd.f32 %v391, %v410
        %v617 = vadd.f32 %v392, %v410
        %v618 = vadd.f32 %v393, %v410
        %v619 = vadd.f32 %v394, %v410
        %v620 = vadd.f32 %v395, %v410
        %v621 = vadd.f32 %v396, %v410
        %v622 = vadd.f32 %v397, %v410
        %v623 = vadd.f32 %v398, %v410
        %v624 = vadd.f32 %v399, %v410
        %v625 = vadd.f32 %v400, %v410
        %v626 = vadd.f32 %v401, %v410
        %v627 = vadd.f32 %v402, %v410
        %v628 = vadd.f32 %v403, %v410
        %v629 = vadd.f32 %v404, %v410
        %v630 = vadd.f32 %v405, %v410
        %v631 = vadd.f32 %v406, %v410
        %v632 = vadd.f32 %v407, %v410
        %v633 = vadd.f32 %v408, %v410
        %v634 = vadd.f32 %v409, %v410
        %v635 = vmax.f32 %v411, 0.0
        %v636 = vmax.f32 %v412, 0.0
        %v637 = vmax.f32 %v413, 0.0
        %v638 = vmax.f32 %v414, 0.0
        %v639 = vmax.f32 %v415, 0.0
        %v640 = vmax.f32 %v416, 0.0
        %v641 = vmax.f32 %v417, 0.0
        %v642 = vmax.f32 %v418, 0.0
        %v643 = vmax.f32 %v419, 0.0
        %v644 = vmax.f32 %v420, 0.0
        %v645 = vmax.f32 %v421, 0.0
        %v646 = vmax.f32 %v422, 0.0
        %v647 = vmax.f32 %v423, 0.0
        %v648 = vmax.f32 %v424, 0.0
        %v649 = vmax.f32 %v425, 0.0
        %v650 = vmax.f32 %v426, 0.0
        %v651 = vmax.f32 %v427, 0.0
        %v652 = vmax.f32 %v428, 0.0
        %v653 = vmax.f32 %v429, 0.0
        %v654 = vmax.f32 %v430, 0.0
        %v655 = vmax.f32 %v431, 0.0
        %v656 = vmax.f32 %v432, 0.0
        %v657 = vmax.f32 %v433, 0.0
        %v658 = vmax.f32 %v434, 0.0
        %v659 = vmax.f32 %v435, 0.0
        %v660 = vmax.f32 %v436, 0.0
        %v661 = vmax.f32 %v437, 0.0
        %v662 = vmax.f32 %v438, 0.0
        %v663 = vmax.f32 %v439, 0.0
        %v664 = vmax.f32 %v440, 0.0
        %v665 = vmax.f32 %v441, 0.0
        %v666 = vmax.f32 %v442, 0.0
        %v667 = vmax.f32 %v443, 0.0
        %v668 = vmax.f32 %v444, 0.0
        %v669 = vmax.f32 %v445, 0.0
        %v670 = vmax.f32 %v446, 0.0
        %v671 = vmax.f32 %v447, 0.0
        %v672 = vmax.f32 %v448, 0.0
        %v673 = vmax.f32 %v449, 0.0
        %v674 = vmax.f32 %v450, 0.0
        %v675 = vmax.f32 %v451, 0.0
        %v676 = vmax.f32 %v452, 0.0
        %v677 = vmax.f32 %v453, 0.0
        %v678 = vmax.f32 %v454, 0.0
        %v679 = vmax.f32 %v455, 0.0
        %v680 = vmax.f32 %v456, 0.0
        %v681 = vmax.f32 %v457, 0.0
        %v682 = vmax.f32 %v458, 0.0
        %v683 = vmax.f32 %v459, 0.0
        %v684 = vmax.f32 %v460, 0.0
        %v685 = vmax.f32 %v461, 0.0
        %v686 = vmax.f32 %v462, 0.0
        %v687 = vmax.f32 %v463, 0.0
        %v688 = vmax.f32 %v464, 0.0
        %v689 = vmax.f32 %v465, 0.0
        %v690 = vmax.f32 %v466, 0.0
        %v691 = vmax.f32 %v467, 0.0
        %v692 = vmax.f32 %v468, 0.0
        %v693 = vmax.f32 %v469, 0.0
        %v694 = vmax.f32 %v470, 0.0
        %v695 = vmax.f32 %v471, 0.0
        %v696 = vmax.f32 %v472, 0.0
        %v697 = vmax.f32 %v473, 0.0
        %v698 = vmax.f32 %v474, 0.0
        %v699 = vmax.f32 %v475, 0.0
        %v700 = vmax.f32 %v476, 0.0
        %v701 = vmax.f32 %v477, 0.0
        %v702 = vmax.f32 %v478, 0.0
        %v703 = vmax.f32 %v479, 0.0
        %v704 = vmax.f32 %v480, 0.0
        %v705 = vmax.f32 %v481, 0.0
        %v706 = vmax.f32 %v482, 0.0
        %v707 = vmax.f32 %v483, 0.0
        %v708 = vmax.f32 %v484, 0.0
        %v709 = vmax.f32 %v485, 0.0
        %v710 = vmax.f32 %v486, 0.0
        %v711 = vmax.f32 %v487, 0.0
        %v712 = vmax.f32 %v488, 0.0
        %v713 = vmax.f32 %v489, 0.0
        %v714 = vmax.f32 %v490, 0.0
        %v715 = vmax.f32 %v491, 0.0
        %v716 = vmax.f32 %v492, 0.0
        %v717 = vmax.f32 %v493, 0.0
        %v718 = vmax.f32 %v494, 0.0
        %v719 = vmax.f32 %v495, 0.0
        %v720 = vmax.f32 %v496, 0.0
        %v721 = vmax.f32 %v497, 0.0
        %v722 = vmax.f32 %v498, 0.0
        %v723 = vmax.f32 %v499, 0.0
        %v724 = vmax.f32 %v500, 0.0
        %v725 = vmax.f32 %v501, 0.0
        %v726 = vmax.f32 %v502, 0.0
        %v727 = vmax.f32 %v503, 0.0
        %v728 = vmax.f32 %v504, 0.0
        %v729 = vmax.f32 %v505, 0.0
        %v730 = vmax.f32 %v506, 0.0
        %v731 = vmax.f32 %v507, 0.0
        %v732 = vmax.f32 %v508, 0.0
        %v733 = vmax.f32 %v509, 0.0
        %v734 = vmax.f32 %v510, 0.0
        %v735 = vmax.f32 %v511, 0.0
        %v736 = vmax.f32 %v512, 0.0
        %v737 = vmax.f32 %v513, 0.0
        %v738 = vmax.f32 %v514, 0.0
        %v739 = vmax.f32 %v515, 0.0
        %v740 = vmax.f32 %v516, 0.0
        %v741 = vmax.f32 %v517, 0.0
        %v742 = vmax.f32 %v518, 0.0
        %v743 = vmax.f32 %v519, 0.0
        %v744 = vmax.f32 %v520, 0.0
        %v745 = vmax.f32 %v521, 0.0
        %v746 = vmax.f32 %v522, 0.0
        %v747 = vmax.f32 %v523, 0.0
        %v748 = vmax.f32 %v524, 0.0
        %v749 = vmax.f32 %v525, 0.0
        %v750 = vmax.f32 %v526, 0.0
        %v751 = vmax.f32 %v527, 0.0
        %v752 = vmax.f32 %v528, 0.0
        %v753 = vmax.f32 %v529, 0.0
        %v754 = vmax.f32 %v530, 0.0
        %v755 = vmax.f32 %v531, 0.0
        %v756 = vmax.f32 %v532, 0.0
        %v757 = vmax.f32 %v533, 0.0
        %v758 = vmax.f32 %v534, 0.0
        %v759 = vmax.f32 %v535, 0.0
        %v760 = vmax.f32 %v536, 0.0
        %v761 = vmax.f32 %v537, 0.0
        %v762 = vmax.f32 %v538, 0.0
        %v763 = vmax.f32 %v539, 0.0
        %v764 = vmax.f32 %v540, 0.0
        %v765 = vmax.f32 %v541, 0.0
        %v766 = vmax.f32 %v542, 0.0
        %v767 = vmax.f32 %v543, 0.0
        %v768 = vmax.f32 %v544, 0.0
        %v769 = vmax.f32 %v545, 0.0
        %v770 = vmax.f32 %v546, 0.0
        %v771 = vmax.f32 %v547, 0.0
        %v772 = vmax.f32 %v548, 0.0
        %v773 = vmax.f32 %v549, 0.0
        %v774 = vmax.f32 %v550, 0.0
        %v775 = vmax.f32 %v551, 0.0
        %v776 = vmax.f32 %v552, 0.0
        %v777 = vmax.f32 %v553, 0.0
        %v778 = vmax.f32 %v554, 0.0
        %v779 = vmax.f32 %v555, 0.0
        %v780 = vmax.f32 %v556, 0.0
        %v781 = vmax.f32 %v557, 0.0
        %v782 = vmax.f32 %v558, 0.0
        %v783 = vmax.f32 %v559, 0.0
        %v784 = vmax.f32 %v560, 0.0
        %v785 = vmax.f32 %v561, 0.0
        %v786 = vmax.f32 %v562, 0.0
        %v787 = vmax.f32 %v563, 0.0
        %v788 = vmax.f32 %v564, 0.0
        %v789 = vmax.f32 %v565, 0.0
        %v790 = vmax.f32 %v566, 0.0
        %v791 = vmax.f32 %v567, 0.0
        %v792 = vmax.f32 %v568, 0.0
        %v793 = vmax.f32 %v569, 0.0
        %v794 = vmax.f32 %v570, 0.0
        %v795 = vmax.f32 %v571, 0.0
        %v796 = vmax.f32 %v572, 0.0
        %v797 = vmax.f32 %v573, 0.0
        %v798 = vmax.f32 %v574, 0.0
        %v799 = vmax.f32 %v575, 0.0
        %v800 = vmax.f32 %v576, 0.0
        %v801 = vmax.f32 %v577, 0.0
        %v802 = vmax.f32 %v578, 0.0
        %v803 = vmax.f32 %v579, 0.0
        %v804 = vmax.f32 %v580, 0.0
        %v805 = vmax.f32 %v581, 0.0
        %v806 = vmax.f32 %v582, 0.0
        %v807 = vmax.f32 %v583, 0.0
        %v808 = vmax.f32 %v584, 0.0
        %v809 = vmax.f32 %v585, 0.0
        %v810 = vmax.f32 %v586, 0.0
        %v811 = vmax.f32 %v587, 0.0
        %v812 = vmax.f32 %v588, 0.0
        %v813 = vmax.f32 %v589, 0.0
        %v814 = vmax.f32 %v590, 0.0
        %v815 = vmax.f32 %v591, 0.0
        %v816 = vmax.f32 %v592, 0.0
        %v817 = vmax.f32 %v593, 0.0
        %v818 = vmax.f32 %v594, 0.0
        %v819 = vmax.f32 %v595, 0.0
        %v820 = vmax.f32 %v596, 0.0
        %v821 = vmax.f32 %v597, 0.0
        %v822 = vmax.f32 %v598, 0.0
        %v823 = vmax.f32 %v599, 0.0
        %v824 = vmax.f32 %v600, 0.0
        %v825 = vmax.f32 %v601, 0.0
        %v826 = vmax.f32 %v602, 0.0
        %v827 = vmax.f32 %v603, 0.0
        %v828 = vmax.f32 %v604, 0.0
        %v829 = vmax.f32 %v605, 0.0
        %v830 = vmax.f32 %v606, 0.0
        %v831 = vmax.f32 %v607, 0.0
        %v832 = vmax.f32 %v608, 0.0
        %v833 = vmax.f32 %v609, 0.0
        %v834 = vmax.f32 %v610, 0.0
        %v835 = vmax.f32 %v611, 0.0
        %v836 = vmax.f32 %v612, 0.0
        %v837 = vmax.f32 %v613, 0.0
        %v838 = vmax.f32 %v614, 0.0
        %v839 = vmax.f32 %v615, 0.0
        %v840 = vmax.f32 %v616, 0.0
        %v841 = vmax.f32 %v617, 0.0
        %v842 = vmax.f32 %v618, 0.0
        %v843 = vmax.f32 %v619, 0.0
        %v844 = vmax.f32 %v620, 0.0
        %v845 = vmax.f32 %v621, 0.0
        %v846 = vmax.f32 %v622, 0.0
        %v847 = vmax.f32 %v623, 0.0
        %v848 = vmax.f32 %v624, 0.0
        %v849 = vmax.f32 %v625, 0.0
        %v850 = vmax.f32 %v626, 0.0
        %v851 = vmax.f32 %v627, 0.0
        %v852 = vmax.f32 %v628, 0.0
        %v853 = vmax.f32 %v629, 0.0
        %v854 = vmax.f32 %v630, 0.0
        %v855 = vmax.f32 %v631, 0.0
        %v856 = vmax.f32 %v632, 0.0
        %v857 = vmax.f32 %v633, 0.0
        %v858 = vmax.f32 %v634, 0.0
        %v859 = vmin.f32 %v635, 1.0
        %v860 = vmin.f32 %v636, 1.0
        %v861 = vmin.f32 %v637, 1.0
        %v862 = vmin.f32 %v638, 1.0
        %v863 = vmin.f32 %v639, 1.0
        %v864 = vmin.f32 %v640, 1.0
        %v865 = vmin.f32 %v641, 1.0
        %v866 = vmin.f32 %v642, 1.0
        %v867 = vmin.f32 %v643, 1.0
        %v868 = vmin.f32 %v644, 1.0
        %v869 = vmin.f32 %v645, 1.0
        %v870 = vmin.f32 %v646, 1.0
        %v871 = vmin.f32 %v647, 1.0
        %v872 = vmin.f32 %v648, 1.0
        %v873 = vmin.f32 %v649, 1.0
        %v874 = vmin.f32 %v650, 1.0
        %v875 = vmin.f32 %v651, 1.0
        %v876 = vmin.f32 %v652, 1.0
        %v877 = vmin.f32 %v653, 1.0
        %v878 = vmin.f32 %v654, 1.0
        %v879 = vmin.f32 %v655, 1.0
        %v880 = vmin.f32 %v656, 1.0
        %v881 = vmin.f32 %v657, 1.0
        %v882 = vmin.f32 %v658, 1.0
        %v883 = vmin.f32 %v659, 1.0
        %v884 = vmin.f32 %v660, 1.0
        %v885 = vmin.f32 %v661, 1.0
        %v886 = vmin.f32 %v662, 1.0
        %v887 = vmin.f32 %v663, 1.0
        %v888 = vmin.f32 %v664, 1.0
        %v889 = vmin.f32 %v665, 1.0
        %v890 = vmin.f32 %v666, 1.0
        %v891 = vmin.f32 %v667, 1.0
        %v892 = vmin.f32 %v668, 1.0
        %v893 = vmin.f32 %v669, 1.0
        %v894 = vmin.f32 %v670, 1.0
        %v895 = vmin.f32 %v671, 1.0
        %v896 = vmin.f32 %v672, 1.0
        %v897 = vmin.f32 %v673, 1.0
        %v898 = vmin.f32 %v674, 1.0
        %v899 = vmin.f32 %v675, 1.0
        %v900 = vmin.f32 %v676, 1.0
        %v901 = vmin.f32 %v677, 1.0
        %v902 = vmin.f32 %v678, 1.0
        %v903 = vmin.f32 %v679, 1.0
        %v904 = vmin.f32 %v680, 1.0
        %v905 = vmin.f32 %v681, 1.0
        %v906 = vmin.f32 %v682, 1.0
        %v907 = vmin.f32 %v683, 1.0
        %v908 = vmin.f32 %v684, 1.0
        %v909 = vmin.f32 %v685, 1.0
        %v910 = vmin.f32 %v686, 1.0
        %v911 = vmin.f32 %v687, 1.0
        %v912 = vmin.f32 %v688, 1.0
        %v913 = vmin.f32 %v689, 1.0
        %v914 = vmin.f32 %v690, 1.0
        %v915 = vmin.f32 %v691, 1.0
        %v916 = vmin.f32 %v692, 1.0
        %v917 = vmin.f32 %v693, 1.0
        %v918 = vmin.f32 %v694, 1.0
        %v919 = vmin.f32 %v695, 1.0
        %v920 = vmin.f32 %v696, 1.0
        %v921 = vmin.f32 %v697, 1.0
        %v922 = vmin.f32 %v698, 1.0
        %v923 = vmin.f32 %v699, 1.0
        %v924 = vmin.f32 %v700, 1.0
        %v925 = vmin.f32 %v701, 1.0
        %v926 = vmin.f32 %v702, 1.0
        %v927 = vmin.f32 %v703, 1.0
        %v928 = vmin.f32 %v704, 1.0
        %v929 = vmin.f32 %v705, 1.0
        %v930 = vmin.f32 %v706, 1.0
        %v931 = vmin.f32 %v707, 1.0
        %v932 = vmin.f32 %v708, 1.0
        %v933 = vmin.f32 %v709, 1.0
        %v934 = vmin.f32 %v710, 1.0
        %v935 = vmin.f32 %v711, 1.0
        %v936 = vmin.f32 %v712, 1.0
        %v937 = vmin.f32 %v713, 1.0
        %v938 = vmin.f32 %v714, 1.0
        %v939 = vmin.f32 %v715, 1.0
        %v940 = vmin.f32 %v716, 1.0
        %v941 = vmin.f32 %v717, 1.0
        %v942 = vmin.f32 %v718, 1.0
        %v943 = vmin.f32 %v719, 1.0
        %v944 = vmin.f32 %v720, 1.0
        %v945 = vmin.f32 %v721, 1.0
        %v946 = vmin.f32 %v722, 1.0
        %v947 = vmin.f32 %v723, 1.0
        %v948 = vmin.f32 %v724, 1.0
        %v949 = vmin.f32 %v725, 1.0
        %v950 = vmin.f32 %v726, 1.0
        %v951 = vmin.f32 %v727, 1.0
        %v952 = vmin.f32 %v728, 1.0
        %v953 = vmin.f32 %v729, 1.0
        %v954 = vmin.f32 %v730, 1.0
        %v955 = vmin.f32 %v731, 1.0
        %v956 = vmin.f32 %v732, 1.0
        %v957 = vmin.f32 %v733, 1.0
        %v958 = vmin.f32 %v734, 1.0
        %v959 = vmin.f32 %v735, 1.0
        %v960 = vmin.f32 %v736, 1.0
        %v961 = vmin.f32 %v737, 1.0
        %v962 = vmin.f32 %v738, 1.0
        %v963 = vmin.f32 %v739, 1.0
        %v964 = vmin.f32 %v740, 1.0
        %v965 = vmin.f32 %v741, 1.0
        %v966 = vmin.f32 %v742, 1.0
        %v967 = vmin.f32 %v743, 1.0
        %v968 = vmin.f32 %v744, 1.0
        %v969 = vmin.f32 %v745, 1.0
        %v970 = vmin.f32 %v746, 1.0
        %v971 = vmin.f32 %v747, 1.0
        %v972 = vmin.f32 %v748, 1.0
        %v973 = vmin.f32 %v749, 1.0
        %v974 = vmin.f32 %v750, 1.0
        %v975 = vmin.f32 %v751, 1.0
        %v976 = vmin.f32 %v752, 1.0
        %v977 = vmin.f32 %v753, 1.0
        %v978 = vmin.f32 %v754, 1.0
        %v979 = vmin.f32 %v755, 1.0
        %v980 = vmin.f32 %v756, 1.0
        %v981 = vmin.f32 %v757, 1.0
        %v982 = vmin.f32 %v758, 1.0
        %v983 = vmin.f32 %v759, 1.0
        %v984 = vmin.f32 %v760, 1.0
        %v985 = vmin.f32 %v761, 1.0
        %v986 = vmin.f32 %v762, 1.0
        %v987 = vmin.f32 %v763, 1.0
        %v988 = vmin.f32 %v764, 1.0
        %v989 = vmin.f32 %v765, 1.0
        %v990 = vmin.f32 %v766, 1.0
        %v991 = vmin.f32 %v767, 1.0
        %v992 = vmin.f32 %v768, 1.0
        %v993 = vmin.f32 %v769, 1.0
        %v994 = vmin.f32 %v770, 1.0
        %v995 = vmin.f32 %v771, 1.0
        %v996 = vmin.f32 %v772, 1.0
        %v997 = vmin.f32 %v773, 1.0
        %v998 = vmin.f32 %v774, 1.0
        %v999 = vmin.f32 %v775, 1.0
        %v1000 = vmin.f32 %v776, 1.0
        %v1001 = vmin.f32 %v777, 1.0
        %v1002 = vmin.f32 %v778, 1.0
        %v1003 = vmin.f32 %v779, 1.0
        %v1004 = vmin.f32 %v780, 1.0
        %v1005 = vmin.f32 %v781, 1.0
        %v1006 = vmin.f32 %v782, 1.0
        %v1007 = vmin.f32 %v783, 1.0
        %v1008 = vmin.f32 %v784, 1.0
        %v1009 = vmin.f32 %v785, 1.0
        %v1010 = vmin.f32 %v786, 1.0
        %v1011 = vmin.f32 %v787, 1.0
        %v1012 = vmin.f32 %v788, 1.0
        %v1013 = vmin.f32 %v789, 1.0
        %v1014 = vmin.f32 %v790, 1.0
        %v1015 = vmin.f32 %v791, 1.0
        %v1016 = vmin.f32 %v792, 1.0
        %v1017 = vmin.f32 %v793, 1.0
        %v1018 = vmin.f32 %v794, 1.0
        %v1019 = vmin.f32 %v795, 1.0
        %v1020 = vmin.f32 %v796, 1.0
        %v1021 = vmin.f32 %v797, 1.0
        %v1022 = vmin.f32 %v798, 1.0
        %v1023 = vmin.f32 %v799, 1.0
        %v1024 = vmin.f32 %v800, 1.0
        %v1025 = vmin.f32 %v801, 1.0
        %v1026 = vmin.f32 %v802, 1.0
        %v1027 = vmin.f32 %v803, 1.0
        %v1028 = vmin.f32 %v804, 1.0
        %v1029 = vmin.f32 %v805, 1.0
        %v1030 = vmin.f32 %v806, 1.0
        %v1031 = vmin.f32 %v807, 1.0
        %v1032 = vmin.f32 %v808, 1.0
        %v1033 = vmin.f32 %v809, 1.0
        %v1034 = vmin.f32 %v810, 1.0
        %v1035 = vmin.f32 %v811, 1.0
        %v1036 = vmin.f32 %v812, 1.0
        %v1037 = vmin.f32 %v813, 1.0
        %v1038 = vmin.f32 %v814, 1.0
        %v1039 = vmin.f32 %v815, 1.0
        %v1040 = vmin.f32 %v816, 1.0
        %v1041 = vmin.f32 %v817, 1.0
        %v1042 = vmin.f32 %v818, 1.0
        %v1043 = vmin.f32 %v819, 1.0
        %v1044 = vmin.f32 %v820, 1.0
        %v1045 = vmin.f32 %v821, 1.0
        %v1046 = vmin.f32 %v822, 1.0
        %v1047 = vmin.f32 %v823, 1.0
        %v1048 = vmin.f32 %v824, 1.0
        %v1049 = vmin.f32 %v825, 1.0
        %v1050 = vmin.f32 %v826, 1.0
        %v1051 = vmin.f32 %v827, 1.0
        %v1052 = vmin.f32 %v828, 1.0
        %v1053 = vmin.f32 %v829, 1.0
        %v1054 = vmin.f32 %v830, 1.0
        %v1055 = vmin.f32 %v831, 1.0
        %v1056 = vmin.f32 %v832, 1.0
        %v1057 = vmin.f32 %v833, 1.0
        %v1058 = vmin.f32 %v834, 1.0
        %v1059 = vmin.f32 %v835, 1.0
        %v1060 = vmin.f32 %v836, 1.0
        %v1061 = vmin.f32 %v837, 1.0
        %v1062 = vmin.f32 %v838, 1.0
        %v1063 = vmin.f32 %v839, 1.0
        %v1064 = vmin.f32 %v840, 1.0
        %v1065 = vmin.f32 %v841, 1.0
        %v1066 = vmin.f32 %v842, 1.0
        %v1067 = vmin.f32 %v843, 1.0
        %v1068 = vmin.f32 %v844, 1.0
        %v1069 = vmin.f32 %v845, 1.0
        %v1070 = vmin.f32 %v846, 1.0
        %v1071 = vmin.f32 %v847, 1.0
        %v1072 = vmin.f32 %v848, 1.0
        %v1073 = vmin.f32 %v849, 1.0
        %v1074 = vmin.f32 %v850, 1.0
        %v1075 = vmin.f32 %v851, 1.0
        %v1076 = vmin.f32 %v852, 1.0
        %v1077 = vmin.f32 %v853, 1.0
        %v1078 = vmin.f32 %v854, 1.0
        %v1079 = vmin.f32 %v855, 1.0
        %v1080 = vmin.f32 %v856, 1.0
        %v1081 = vmin.f32 %v857, 1.0
        %v1082 = vmin.f32 %v858, 1.0
        %1083 = vst [vmem:[%s170] sm:$0xff] %v859
        %1084 = vst [vmem:[%s170 + $0x8] sm:$0xff] %v860
        %1085 = vst [vmem:[%s170 + $0x10] sm:$0xff] %v861
        %1086 = vst [vmem:[%s170 + $0x18] sm:$0xff] %v862
        %1087 = vst [vmem:[%s170 + $0x20] sm:$0xff] %v863
        %1088 = vst [vmem:[%s170 + $0x28] sm:$0xff] %v864
        %1089 = vst [vmem:[%s170 + $0x30] sm:$0xff] %v865
        %1090 = vst [vmem:[%s170 + $0x38] sm:$0xff] %v866
        %1091 = vst [vmem:[%s170 + $0x40] sm:$0xff] %v867
        %1092 = vst [vmem:[%s170 + $0x48] sm:$0xff] %v868
        %1093 = vst [vmem:[%s170 + $0x50] sm:$0xff] %v869
        %1094 = vst [vmem:[%s170 + $0x58] sm:$0xff] %v870
        %1095 = vst [vmem:[%s170 + $0x60] sm:$0xff] %v871
        %1096 = vst [vmem:[%s170 + $0x68] sm:$0xff] %v872
        %1097 = vst [vmem:[%s170 + $0x70] sm:$0xff] %v873
        %1098 = vst [vmem:[%s170 + $0x78] sm:$0xff] %v874
        %1099 = vst [vmem:[%s170 + $0x80] sm:$0xff] %v875
        %1100 = vst [vmem:[%s170 + $0x88] sm:$0xff] %v876
        %1101 = vst [vmem:[%s170 + $0x90] sm:$0xff] %v877
        %1102 = vst [vmem:[%s170 + $0x98] sm:$0xff] %v878
        %1103 = vst [vmem:[%s170 + $0xa0] sm:$0xff] %v879
        %1104 = vst [vmem:[%s170 + $0xa8] sm:$0xff] %v880
        %1105 = vst [vmem:[%s170 + $0xb0] sm:$0xff] %v881
        %1106 = vst [vmem:[%s170 + $0xb8] sm:$0xff] %v882
        %1107 = vst [vmem:[%s170 + $0xc0] sm:$0xff] %v883
        %1108 = vst [vmem:[%s170 + $0xc8] sm:$0xff] %v884
        %1109 = vst [vmem:[%s170 + $0xd0] sm:$0xff] %v885
        %1110 = vst [vmem:[%s170 + $0xd8] sm:$0xff] %v886
        %1111 = vst [vmem:[%s170 + $0xe0] sm:$0xff] %v887
        %1112 = vst [vmem:[%s170 + $0xe8] sm:$0xff] %v888
        %1113 = vst [vmem:[%s170 + $0xf0] sm:$0xff] %v889
        %1114 = vst [vmem:[%s170 + $0xf8] sm:$0xff] %v890
        %1115 = vst [vmem:[%s170 + $0x100] sm:$0xff] %v891
        %1116 = vst [vmem:[%s170 + $0x108] sm:$0xff] %v892
        %1117 = vst [vmem:[%s170 + $0x110] sm:$0xff] %v893
        %1118 = vst [vmem:[%s170 + $0x118] sm:$0xff] %v894
        %1119 = vst [vmem:[%s170 + $0x120] sm:$0xff] %v895
        %1120 = vst [vmem:[%s170 + $0x128] sm:$0xff] %v896
        %1121 = vst [vmem:[%s170 + $0x130] sm:$0xff] %v897
        %1122 = vst [vmem:[%s170 + $0x138] sm:$0xff] %v898
        %1123 = vst [vmem:[%s170 + $0x140] sm:$0xff] %v899
        %1124 = vst [vmem:[%s170 + $0x148] sm:$0xff] %v900
        %1125 = vst [vmem:[%s170 + $0x150] sm:$0xff] %v901
        %1126 = vst [vmem:[%s170 + $0x158] sm:$0xff] %v902
        %1127 = vst [vmem:[%s170 + $0x160] sm:$0xff] %v903
        %1128 = vst [vmem:[%s170 + $0x168] sm:$0xff] %v904
        %1129 = vst [vmem:[%s170 + $0x170] sm:$0xff] %v905
        %1130 = vst [vmem:[%s170 + $0x178] sm:$0xff] %v906
        %1131 = vst [vmem:[%s170 + $0x180] sm:$0xff] %v907
        %1132 = vst [vmem:[%s170 + $0x188] sm:$0xff] %v908
        %1133 = vst [vmem:[%s170 + $0x190] sm:$0xff] %v909
        %1134 = vst [vmem:[%s170 + $0x198] sm:$0xff] %v910
        %1135 = vst [vmem:[%s170 + $0x1a0] sm:$0xff] %v911
        %1136 = vst [vmem:[%s170 + $0x1a8] sm:$0xff] %v912
        %1137 = vst [vmem:[%s170 + $0x1b0] sm:$0xff] %v913
        %1138 = vst [vmem:[%s170 + $0x1b8] sm:$0xff] %v914
        %1139 = vst [vmem:[%s170 + $0x1c0] sm:$0xff] %v915
        %1140 = vst [vmem:[%s170 + $0x1c8] sm:$0xff] %v916
        %1141 = vst [vmem:[%s170 + $0x1d0] sm:$0xff] %v917
        %1142 = vst [vmem:[%s170 + $0x1d8] sm:$0xff] %v918
        %1143 = vst [vmem:[%s170 + $0x1e0] sm:$0xff] %v919
        %1144 = vst [vmem:[%s170 + $0x1e8] sm:$0xff] %v920
        %1145 = vst [vmem:[%s170 + $0x1f0] sm:$0xff] %v921
        %1146 = vst [vmem:[%s170 + $0x1f8] sm:$0xff] %v922
        %1147 = vst [vmem:[%s170 + $0x200] sm:$0xff] %v923
        %1148 = vst [vmem:[%s170 + $0x208] sm:$0xff] %v924
        %1149 = vst [vmem:[%s170 + $0x210] sm:$0xff] %v925
        %1150 = vst [vmem:[%s170 + $0x218] sm:$0xff] %v926
        %1151 = vst [vmem:[%s170 + $0x220] sm:$0xff] %v927
        %1152 = vst [vmem:[%s170 + $0x228] sm:$0xff] %v928
        %1153 = vst [vmem:[%s170 + $0x230] sm:$0xff] %v929
        %1154 = vst [vmem:[%s170 + $0x238] sm:$0xff] %v930
        %1155 = vst [vmem:[%s170 + $0x240] sm:$0xff] %v931
        %1156 = vst [vmem:[%s170 + $0x248] sm:$0xff] %v932
        %1157 = vst [vmem:[%s170 + $0x250] sm:$0xff] %v933
        %1158 = vst [vmem:[%s170 + $0x258] sm:$0xff] %v934
        %1159 = vst [vmem:[%s170 + $0x260] sm:$0xff] %v935
        %1160 = vst [vmem:[%s170 + $0x268] sm:$0xff] %v936
        %1161 = vst [vmem:[%s170 + $0x270] sm:$0xff] %v937
        %1162 = vst [vmem:[%s170 + $0x278] sm:$0xff] %v938
        %1163 = vst [vmem:[%s170 + $0x280] sm:$0xff] %v939
        %1164 = vst [vmem:[%s170 + $0x288] sm:$0xff] %v940
        %1165 = vst [vmem:[%s170 + $0x290] sm:$0xff] %v941
        %1166 = vst [vmem:[%s170 + $0x298] sm:$0xff] %v942
        %1167 = vst [vmem:[%s170 + $0x2a0] sm:$0xff] %v943
        %1168 = vst [vmem:[%s170 + $0x2a8] sm:$0xff] %v944
        %1169 = vst [vmem:[%s170 + $0x2b0] sm:$0xff] %v945
        %1170 = vst [vmem:[%s170 + $0x2b8] sm:$0xff] %v946
        %1171 = vst [vmem:[%s170 + $0x2c0] sm:$0xff] %v947
        %1172 = vst [vmem:[%s170 + $0x2c8] sm:$0xff] %v948
        %1173 = vst [vmem:[%s170 + $0x2d0] sm:$0xff] %v949
        %1174 = vst [vmem:[%s170 + $0x2d8] sm:$0xff] %v950
        %1175 = vst [vmem:[%s170 + $0x2e0] sm:$0xff] %v951
        %1176 = vst [vmem:[%s170 + $0x2e8] sm:$0xff] %v952
        %1177 = vst [vmem:[%s170 + $0x2f0] sm:$0xff] %v953
        %1178 = vst [vmem:[%s170 + $0x2f8] sm:$0xff] %v954
        %1179 = vst [vmem:[%s170 + $0x300] sm:$0xff] %v955
        %1180 = vst [vmem:[%s170 + $0x308] sm:$0xff] %v956
        %1181 = vst [vmem:[%s170 + $0x310] sm:$0xff] %v957
        %1182 = vst [vmem:[%s170 + $0x318] sm:$0xff] %v958
        %1183 = vst [vmem:[%s170 + $0x320] sm:$0xff] %v959
        %1184 = vst [vmem:[%s170 + $0x328] sm:$0xff] %v960
        %1185 = vst [vmem:[%s170 + $0x330] sm:$0xff] %v961
        %1186 = vst [vmem:[%s170 + $0x338] sm:$0xff] %v962
        %1187 = vst [vmem:[%s170 + $0x340] sm:$0xff] %v963
        %1188 = vst [vmem:[%s170 + $0x348] sm:$0xff] %v964
        %1189 = vst [vmem:[%s170 + $0x350] sm:$0xff] %v965
        %1190 = vst [vmem:[%s170 + $0x358] sm:$0xff] %v966
        %1191 = vst [vmem:[%s170 + $0x360] sm:$0xff] %v967
        %1192 = vst [vmem:[%s170 + $0x368] sm:$0xff] %v968
        %1193 = vst [vmem:[%s170 + $0x370] sm:$0xff] %v969
        %1194 = vst [vmem:[%s170 + $0x378] sm:$0xff] %v970
        %1195 = vst [vmem:[%s170 + $0x380] sm:$0xff] %v971
        %1196 = vst [vmem:[%s170 + $0x388] sm:$0xff] %v972
        %1197 = vst [vmem:[%s170 + $0x390] sm:$0xff] %v973
        %1198 = vst [vmem:[%s170 + $0x398] sm:$0xff] %v974
        %1199 = vst [vmem:[%s170 + $0x3a0] sm:$0xff] %v975
        %1200 = vst [vmem:[%s170 + $0x3a8] sm:$0xff] %v976
        %1201 = vst [vmem:[%s170 + $0x3b0] sm:$0xff] %v977
        %1202 = vst [vmem:[%s170 + $0x3b8] sm:$0xff] %v978
        %1203 = vst [vmem:[%s170 + $0x3c0] sm:$0xff] %v979
        %1204 = vst [vmem:[%s170 + $0x3c8] sm:$0xff] %v980
        %1205 = vst [vmem:[%s170 + $0x3d0] sm:$0xff] %v981
        %1206 = vst [vmem:[%s170 + $0x3d8] sm:$0xff] %v982
        %1207 = vst [vmem:[%s170 + $0x3e0] sm:$0xff] %v983
        %1208 = vst [vmem:[%s170 + $0x3e8] sm:$0xff] %v984
        %1209 = vst [vmem:[%s170 + $0x3f0] sm:$0xff] %v985
        %1210 = vst [vmem:[%s170 + $0x3f8] sm:$0xff] %v986
        %1211 = vst [vmem:[%s170 + $0x400] sm:$0xff] %v987
        %1212 = vst [vmem:[%s170 + $0x408] sm:$0xff] %v988
        %1213 = vst [vmem:[%s170 + $0x410] sm:$0xff] %v989
        %1214 = vst [vmem:[%s170 + $0x418] sm:$0xff] %v990
        %1215 = vst [vmem:[%s170 + $0x420] sm:$0xff] %v991
        %1216 = vst [vmem:[%s170 + $0x428] sm:$0xff] %v992
        %1217 = vst [vmem:[%s170 + $0x430] sm:$0xff] %v993
        %1218 = vst [vmem:[%s170 + $0x438] sm:$0xff] %v994
        %1219 = vst [vmem:[%s170 + $0x440] sm:$0xff] %v995
        %1220 = vst [vmem:[%s170 + $0x448] sm:$0xff] %v996
        %1221 = vst [vmem:[%s170 + $0x450] sm:$0xff] %v997
        %1222 = vst [vmem:[%s170 + $0x458] sm:$0xff] %v998
        %1223 = vst [vmem:[%s170 + $0x460] sm:$0xff] %v999
        %1224 = vst [vmem:[%s170 + $0x468] sm:$0xff] %v1000
        %1225 = vst [vmem:[%s170 + $0x470] sm:$0xff] %v1001
        %1226 = vst [vmem:[%s170 + $0x478] sm:$0xff] %v1002
        %1227 = vst [vmem:[%s170 + $0x480] sm:$0xff] %v1003
        %1228 = vst [vmem:[%s170 + $0x488] sm:$0xff] %v1004
        %1229 = vst [vmem:[%s170 + $0x490] sm:$0xff] %v1005
        %1230 = vst [vmem:[%s170 + $0x498] sm:$0xff] %v1006
        %1231 = vst [vmem:[%s170 + $0x4a0] sm:$0xff] %v1007
        %1232 = vst [vmem:[%s170 + $0x4a8] sm:$0xff] %v1008
        %1233 = vst [vmem:[%s170 + $0x4b0] sm:$0xff] %v1009
        %1234 = vst [vmem:[%s170 + $0x4b8] sm:$0xff] %v1010
        %1235 = vst [vmem:[%s170 + $0x4c0] sm:$0xff] %v1011
        %1236 = vst [vmem:[%s170 + $0x4c8] sm:$0xff] %v1012
        %1237 = vst [vmem:[%s170 + $0x4d0] sm:$0xff] %v1013
        %1238 = vst [vmem:[%s170 + $0x4d8] sm:$0xff] %v1014
        %1239 = vst [vmem:[%s170 + $0x4e0] sm:$0xff] %v1015
        %1240 = vst [vmem:[%s170 + $0x4e8] sm:$0xff] %v1016
        %1241 = vst [vmem:[%s170 + $0x4f0] sm:$0xff] %v1017
        %1242 = vst [vmem:[%s170 + $0x4f8] sm:$0xff] %v1018
        %1243 = vst [vmem:[%s170 + $0x500] sm:$0xff] %v1019
        %1244 = vst [vmem:[%s170 + $0x508] sm:$0xff] %v1020
        %1245 = vst [vmem:[%s170 + $0x510] sm:$0xff] %v1021
        %1246 = vst [vmem:[%s170 + $0x518] sm:$0xff] %v1022
        %1247 = vst [vmem:[%s170 + $0x520] sm:$0xff] %v1023
        %1248 = vst [vmem:[%s170 + $0x528] sm:$0xff] %v1024
        %1249 = vst [vmem:[%s170 + $0x530] sm:$0xff] %v1025
        %1250 = vst [vmem:[%s170 + $0x538] sm:$0xff] %v1026
        %1251 = vst [vmem:[%s170 + $0x540] sm:$0xff] %v1027
        %1252 = vst [vmem:[%s170 + $0x548] sm:$0xff] %v1028
        %1253 = vst [vmem:[%s170 + $0x550] sm:$0xff] %v1029
        %1254 = vst [vmem:[%s170 + $0x558] sm:$0xff] %v1030
        %1255 = vst [vmem:[%s170 + $0x560] sm:$0xff] %v1031
        %1256 = vst [vmem:[%s170 + $0x568] sm:$0xff] %v1032
        %1257 = vst [vmem:[%s170 + $0x570] sm:$0xff] %v1033
        %1258 = vst [vmem:[%s170 + $0x578] sm:$0xff] %v1034
        %1259 = vst [vmem:[%s170 + $0x580] sm:$0xff] %v1035
        %1260 = vst [vmem:[%s170 + $0x588] sm:$0xff] %v1036
        %1261 = vst [vmem:[%s170 + $0x590] sm:$0xff] %v1037
        %1262 = vst [vmem:[%s170 + $0x598] sm:$0xff] %v1038
        %1263 = vst [vmem:[%s170 + $0x5a0] sm:$0xff] %v1039
        %1264 = vst [vmem:[%s170 + $0x5a8] sm:$0xff] %v1040
        %1265 = vst [vmem:[%s170 + $0x5b0] sm:$0xff] %v1041
        %1266 = vst [vmem:[%s170 + $0x5b8] sm:$0xff] %v1042
        %1267 = vst [vmem:[%s170 + $0x5c0] sm:$0xff] %v1043
        %1268 = vst [vmem:[%s170 + $0x5c8] sm:$0xff] %v1044
        %1269 = vst [vmem:[%s170 + $0x5d0] sm:$0xff] %v1045
        %1270 = vst [vmem:[%s170 + $0x5d8] sm:$0xff] %v1046
        %1271 = vst [vmem:[%s170 + $0x5e0] sm:$0xff] %v1047
        %1272 = vst [vmem:[%s170 + $0x5e8] sm:$0xff] %v1048
        %1273 = vst [vmem:[%s170 + $0x5f0] sm:$0xff] %v1049
        %1274 = vst [vmem:[%s170 + $0x5f8] sm:$0xff] %v1050
        %1275 = vst [vmem:[%s170 + $0x600] sm:$0xff] %v1051
        %1276 = vst [vmem:[%s170 + $0x608] sm:$0xff] %v1052
        %1277 = vst [vmem:[%s170 + $0x610] sm:$0xff] %v1053
        %1278 = vst [vmem:[%s170 + $0x618] sm:$0xff] %v1054
        %1279 = vst [vmem:[%s170 + $0x620] sm:$0xff] %v1055
        %1280 = vst [vmem:[%s170 + $0x628] sm:$0xff] %v1056
        %1281 = vst [vmem:[%s170 + $0x630] sm:$0xff] %v1057
        %1282 = vst [vmem:[%s170 + $0x638] sm:$0xff] %v1058
        %1283 = vst [vmem:[%s170 + $0x640] sm:$0xff] %v1059
        %1284 = vst [vmem:[%s170 + $0x648] sm:$0xff] %v1060
        %1285 = vst [vmem:[%s170 + $0x650] sm:$0xff] %v1061
        %1286 = vst [vmem:[%s170 + $0x658] sm:$0xff] %v1062
        %1287 = vst [vmem:[%s170 + $0x660] sm:$0xff] %v1063
        %1288 = vst [vmem:[%s170 + $0x668] sm:$0xff] %v1064
        %1289 = vst [vmem:[%s170 + $0x670] sm:$0xff] %v1065
        %1290 = vst [vmem:[%s170 + $0x678] sm:$0xff] %v1066
        %1291 = vst [vmem:[%s170 + $0x680] sm:$0xff] %v1067
        %1292 = vst [vmem:[%s170 + $0x688] sm:$0xff] %v1068
        %1293 = vst [vmem:[%s170 + $0x690] sm:$0xff] %v1069
        %1294 = vst [vmem:[%s170 + $0x698] sm:$0xff] %v1070
        %1295 = vst [vmem:[%s170 + $0x6a0] sm:$0xff] %v1071
        %1296 = vst [vmem:[%s170 + $0x6a8] sm:$0xff] %v1072
        %1297 = vst [vmem:[%s170 + $0x6b0] sm:$0xff] %v1073
        %1298 = vst [vmem:[%s170 + $0x6b8] sm:$0xff] %v1074
        %1299 = vst [vmem:[%s170 + $0x6c0] sm:$0xff] %v1075
        %1300 = vst [vmem:[%s170 + $0x6c8] sm:$0xff] %v1076
        %1301 = vst [vmem:[%s170 + $0x6d0] sm:$0xff] %v1077
        %1302 = vst [vmem:[%s170 + $0x6d8] sm:$0xff] %v1078
        %1303 = vst [vmem:[%s170 + $0x6e0] sm:$0xff] %v1079
        %1304 = vst [vmem:[%s170 + $0x6e8] sm:$0xff] %v1080
        %1305 = vst [vmem:[%s170 + $0x6f0] sm:$0xff] %v1081
        %1306 = vst [vmem:[%s170 + $0x6f8] sm:$0xff] %v1082
        %s1307 = sand.u32 %s75, 1
        %s1308 = scalar_lea.sflag [#allocation5], %s1307
        %s1309 = sand.u32 %s75, 1
        %s1310 = smul.addr %s1309, 1792
        %s1311 = scalar_lea.vmem [#allocation6], %s1310
        // Predicated region
        $region33: #{tpu_custom_call.1} parent=27 // pred_check
          %p1312 = pneg %p85
        $region34: #{tpu_custom_call.1} parent=27 // pred_check_branch
          %1314 = sbr.rel (%p1312) target = $region36
        $region35: #{tpu_custom_call.1} parent=27 // pred_region
          %s1315 = smul.u32 28, %s20
          %s1316 = ssub.s32 111, %s1315
          %p1317 = scmp.lt.s32.totalorder %s1316, 28
          %s1318 = scalar_select %p1317, %s1316, 28
          %s1319 = smul.u32 128, %s1318
          %s1320 = smul.u32 %s1319, 8
          %s1322 = ssub.s32 28672, %s1320
          %1323 = vsyncadd %s1308, %s1322
          %p1324 = scmp.ne.s32.totalorder 0, %s1320
          %s1325 = smul.addr %s1315, 8
          %s1326 = smul.addr %s1325, 128
          %s1327 = scalar_lea.hbm %s2, %s1326
          %s1328 = smul.u32 64, %s1318
          %s1329 = sshll.u32 %s1311, 4
          %s1330 = int_to_ptr.vmem [resolvable:$true] %s1329
          %s1331 = sshll.u32 %s1328, 4
          %1335 = dma.vmem_to_hbm [thread:$0]  (%p1324), %s1330, %s1331, %s1327, %s1308, 1024, 1024, 64
        $region36: #{tpu_custom_call.1} parent=27 // pred_fallthru
          _
      $region28: #{tpu_custom_call.1} parent=5 // pred_fallthru
        _
      %p1336 = scmp.le.s32.totalorder 2, %s15
      // Predicated region
      $region37: #{tpu_custom_call.1} parent=5 // pred_check
        %p1337 = pneg %p1336
      $region38: #{tpu_custom_call.1} parent=5 // pred_check_branch
        %1339 = sbr.rel (%p1337) target = $region40
      $region39: #{tpu_custom_call.1} parent=5 // pred_region
        %s1340 = ssub.s32 %s15, 2
        // Predicated region
        $region41: #{tpu_custom_call.1} parent=39 // pred_check
          %p1341 = pneg %p91
        $region42: #{tpu_custom_call.1} parent=39 // pred_check_branch
          %1343 = sbr.rel (%p1341) target = $region44
        $region43: #{tpu_custom_call.1} parent=39 // pred_region
          %s1344 = sand.u32 %s76, 1
          %s1345 = scalar_lea.sflag [#allocation5], %s1344
          %s1346 = sand.u32 %s76, 1
          %s1347 = smul.addr %s1346, 1792
          %s1348 = scalar_lea.vmem [#allocation6], %s1347
          %1349 = dma.done %s1345, 28672
        $region44: #{tpu_custom_call.1} parent=39 // pred_fallthru
          _
      $region40: #{tpu_custom_call.1} parent=5 // pred_fallthru
        _
    $region6: #{tpu_custom_call.1} parent=1 // loop_footer
      %s19 = sadd.s32 1, %s15
    $region7: #{tpu_custom_call.1} parent=1 // loop_footer_branch
      %14 = sbr.rel target = $region3
    $region8: #{tpu_custom_call.1} parent=1 // loop_exit
      _
    %1350 = vsyncpa [#allocation4], 1
    %s1351 = scalar_lea.sflag [#allocation4], 1
    %1352 = vsyncpa %s1351, 1
    %1353 = vsyncpa [#allocation5], 1
    %s1354 = scalar_lea.sflag [#allocation5], 1
    %1355 = vsyncpa %s1354, 1

</llo_original>
